<compile_context>
chip_gen: v7x
topology: tpu7x:2x2x1
jax: 0.10.0
libtpu: 0.0.40
codegen_flags: <defaults>
</compile_context>

<pallas_src>
import functools

import jax
import jax.numpy as jnp
from jax import lax
from jax.experimental import pallas as pl
from jax.experimental.pallas import tpu as pltpu

LANE = 128                     # TPU lane width: channel dims are padded to this
MXU_DTYPE = jnp.bfloat16       # matmul operand dtype (accumulation stays f32)


def _round_up(n, m):
    return ((n + m - 1) // m) * m


# ----------------------------------------------------------------------------
# Fused whole-stack kernel
# ----------------------------------------------------------------------------
def _causal_conv_merged(act_f32, w_ref, b_ref, *, K, dilation, L, masks):
    """One causal dilated conv as a single merged-tap matmul.

    act_f32 : (M, Cin)      f32, M = B_TILE * L (batch-major, time within batch)
    w_ref   : (K*Cin, Cout) bf16 ref (tap k occupies rows [k*Cin, (k+1)*Cin))
    b_ref   : (1, Cout)     f32 ref
    masks   : {shift: (M, 1) bool}, True where the shifted row is causally valid
    Returns (M, Cout) f32 with bias added, no activation.
    """
    parts = []
    for k in range(K):
        s = (K - 1 - k) * dilation
        if s == 0:
            parts.append(act_f32)
        elif s >= L:
            # The whole causal window for this tap lies in the zero padding.
            parts.append(jnp.zeros_like(act_f32))
        else:
            rolled = pltpu.roll(act_f32, shift=s, axis=0)     # rolled[i] = x[i-s]
            parts.append(jnp.where(masks[s], rolled, 0.0))    # zero pad / no cross-batch leak
    operand = jnp.concatenate(parts, axis=-1).astype(MXU_DTYPE)  # (M, K*Cin)
    return jnp.dot(operand, w_ref[...],
                   preferred_element_type=jnp.float32) + b_ref[...]


def _tcn_stack_kernel(x_ref, *refs, layer_meta, K, L, B):
    """Runs every TemporalBlock back-to-back on one batch tile, VMEM-resident.

    x_ref : (B, L, Cip0) f32
    refs  : per layer [w1 (K*Cip,Cop) bf16, b1 (1,Cop) f32,
                       w2 (K*Cop,Cop) bf16, b2 (1,Cop) f32,
                       (wd (Cip,Cop) bf16, bd (1,Cop) f32  if downsample)],
            then o_ref (B, L, Cop_last) f32.
    """
    o_ref = refs[-1]
    wrefs = refs[:-1]
    M = B * L

    act = x_ref[...].reshape(M, x_ref.shape[-1])             # f32 activation

    # Local time index per row and causal-validity masks, built once and reused.
    row_t = lax.broadcasted_iota(jnp.int32, (M, 1), 0) % L
    shifts = sorted({(K - 1 - k) * d for (d, _h) in layer_meta for k in range(K)})
    masks = {s: (row_t >= s) for s in shifts if 0 < s < L}

    idx = 0
    for dilation, has_ds in layer_meta:
        w1, b1, w2, b2 = wrefs[idx:idx + 4]
        idx += 4
        if has_ds:
            wd, bd = wrefs[idx:idx + 2]
            idx += 2

        h = jnp.maximum(
            _causal_conv_merged(act, w1, b1, K=K, dilation=dilation, L=L,
                                masks=masks), 0.0)
        # TODO(synk): nn.Dropout omitted (identity in eval mode).
        out = jnp.maximum(
            _causal_conv_merged(h, w2, b2, K=K, dilation=dilation, L=L,
                                masks=masks), 0.0)

        if has_ds:   # fused 1x1 downsample conv on the residual path
            res = jnp.dot(act.astype(MXU_DTYPE), wd[...],
                          preferred_element_type=jnp.float32) + bd[...]
        else:        # identity residual (Cin == Cout)
            res = act
        act = jnp.maximum(out + res, 0.0)

    o_ref[...] = act.reshape(B, L, o_ref.shape[-1]).astype(o_ref.dtype)


# ----------------------------------------------------------------------------
# pallas_call wrapper: one fused call for the entire stack
# ----------------------------------------------------------------------------
def _tcn_stack(x_nlc, padded_params, kernel_size):
    N, L, cip0 = x_nlc.shape
    co_last = padded_params[-1]["b2"].shape[-1]

    # Batch tile: fold batch into the matmul M dimension, targeting <= 256 rows
    # per grid step (fills the MXU, keeps accumulators in vregs).
    b_tile = 1
    for b in range(1, N + 1):
        if N % b == 0 and b * L <= 256:
            b_tile = b
    # TODO(synk): for very long L add a time-tile grid axis (halo of (K-1)*dil
    # rows per layer) to bound VMEM/vregs and to expose >= 2 parallel grid
    # units for the two v7x TensorCores even when N == 1.

    const2 = lambda n: (0, 0)
    in_specs = [pl.BlockSpec((b_tile, L, cip0), lambda n: (n, 0, 0))]
    args = [x_nlc]
    layer_meta = []
    flops = 0
    weight_bytes = 0
    for i, layer in enumerate(padded_params):
        has_ds = "wd" in layer
        layer_meta.append((2 ** i, has_ds))
        names = ("w1", "b1", "w2", "b2") + (("wd", "bd") if has_ds else ())
        for name in names:
            arr = layer[name]
            in_specs.append(pl.BlockSpec(arr.shape, const2))
            args.append(arr)
            weight_bytes += arr.size * arr.dtype.itemsize
        kcip, cop = layer["w1"].shape
        kcop = layer["w2"].shape[0]
        flops += 2 * N * L * (kcip + kcop) * cop
        if has_ds:
            flops += 2 * N * L * layer["wd"].shape[0] * cop

    kernel = functools.partial(_tcn_stack_kernel, layer_meta=tuple(layer_meta),
                               K=kernel_size, L=L, B=b_tile)
    bytes_accessed = x_nlc.size * 4 + N * L * co_last * 4 + weight_bytes

    return pl.pallas_call(
        kernel,
        grid=(N // b_tile,),
        in_specs=in_specs,
        out_specs=pl.BlockSpec((b_tile, L, co_last), lambda n: (n, 0, 0)),
        out_shape=jax.ShapeDtypeStruct((N, L, co_last), jnp.float32),
        compiler_params=pltpu.CompilerParams(
            dimension_semantics=("parallel",),
            vmem_limit_bytes=48 * 1024 * 1024),
        cost_estimate=pl.CostEstimate(flops=int(flops), transcendentals=0,
                                      bytes_accessed=int(bytes_accessed)),
    )(*args)


# ----------------------------------------------------------------------------
# Parameter construction (deterministic, mirrors TemporalBlock.__init__)
# ----------------------------------------------------------------------------
def _weight_norm(v):
    # weight_norm(dim=0): W = g * v / ||v||, norm over (C_in, K) per out channel.
    # g is initialized to ||v||, so W == v at init; kept for fidelity.
    # TODO(synk): a trained checkpoint has an independent g; import it separately.
    norm = jnp.sqrt(jnp.sum(v * v, axis=(1, 2), keepdims=True))
    return norm * v / norm


def init_tcn_params(key, num_inputs, num_channels, kernel_size=2):
    """Logical (unpadded) f32 parameters, conv layout (K, C_in, C_out)."""
    params = []
    for i, out_ch in enumerate(num_channels):
        in_ch = num_inputs if i == 0 else num_channels[i - 1]
        key, k1, k2, k3, k4, k5, k6 = jax.random.split(key, 7)
        v1 = 0.01 * jax.random.normal(k1, (out_ch, in_ch, kernel_size), jnp.float32)
        v2 = 0.01 * jax.random.normal(k2, (out_ch, out_ch, kernel_size), jnp.float32)
        w1, w2 = _weight_norm(v1), _weight_norm(v2)
        bb1 = 1.0 / jnp.sqrt(in_ch * kernel_size)
        bb2 = 1.0 / jnp.sqrt(out_ch * kernel_size)
        layer = {
            "w1": jnp.transpose(w1, (2, 1, 0)),                     # (K, Cin, Cout)
            "b1": jax.random.uniform(k3, (out_ch,), jnp.float32, -bb1, bb1),
            "w2": jnp.transpose(w2, (2, 1, 0)),
            "b2": jax.random.uniform(k4, (out_ch,), jnp.float32, -bb2, bb2),
        }
        if in_ch != out_ch:                                          # 1x1 downsample
            wd = 0.01 * jax.random.normal(k5, (out_ch, in_ch, 1), jnp.float32)
            bbd = 1.0 / jnp.sqrt(in_ch)
            layer["wd"] = jnp.transpose(wd, (2, 1, 0))
            layer["bd"] = jax.random.uniform(k6, (out_ch,), jnp.float32, -bbd, bbd)
        params.append(layer)
    return params


def pad_params_for_tpu(params):
    """Zero-pad channels to the 128-lane width, cast weights to bf16 and merge
    the K taps into a single (K*Cip, Cop) contraction matrix.  Padded lanes
    provably stay zero through the whole stack (zero-padded biases, ReLU(0)=0,
    zero-padded residual / downsample lanes)."""
    padded = []
    for layer in params:
        K, ci, co = layer["w1"].shape
        cip, cop = _round_up(ci, LANE), _round_up(co, LANE)

        def pad_w(w, rows, cols):
            out = jnp.zeros((w.shape[0], rows, cols), MXU_DTYPE)
            out = out.at[:, :w.shape[1], :w.shape[2]].set(w.astype(MXU_DTYPE))
            return out.reshape(w.shape[0] * rows, cols)

        def pad_b(b, cols):
            return jnp.zeros((1, cols), jnp.float32).at[0, :b.shape[0]].set(b)

        new = {"w1": pad_w(layer["w1"], cip, cop), "b1": pad_b(layer["b1"], cop),
               "w2": pad_w(layer["w2"], cop, cop), "b2": pad_b(layer["b2"], cop)}
        if "wd" in layer:
            new["wd"] = pad_w(layer["wd"], cip, cop)                 # (Cip, Cop)
            new["bd"] = pad_b(layer["bd"], cop)
        padded.append(new)
    return padded


# ----------------------------------------------------------------------------
# Forward pass (= TemporalConvNet.forward)
# ----------------------------------------------------------------------------
def temporal_conv_net(x_ncl, padded_params, out_channels, kernel_size):
    """x_ncl: (N, C_in, L) PyTorch NCL layout. Returns (N, out_channels, L)."""
    N, c_in, L = x_ncl.shape
    cip0 = padded_params[0]["w1"].shape[0] // kernel_size
    # TODO(synk): fold this transpose + lane-pad of the raw input into the first
    # layer of the kernel to save one HBM pass of the input at large shapes.
    x = jnp.transpose(x_ncl, (0, 2, 1))                      # -> (N, L, C)
    x = jnp.pad(x, ((0, 0), (0, 0), (0, cip0 - c_in)))       # lane-pad channels once
    y = _tcn_stack(x, padded_params, kernel_size)            # one fused call
    return jnp.transpose(y[:, :, :out_channels], (0, 2, 1))  # -> (N, C_out, L)


# ----------------------------------------------------------------------------
# Pure-JAX f32 reference (mirrors the PyTorch module in eval mode)
# ----------------------------------------------------------------------------
def _ref_causal_conv(x, w, b, dilation):
    K = w.shape[0]
    pad_ = (K - 1) * dilation
    L = x.shape[-1]
    xp = jnp.pad(x, ((0, 0), (0, 0), (pad_, 0)))
    out = b[None, :, None]
    for k in range(K):
        seg = xp[:, :, k * dilation:k * dilation + L]
        out = out + jnp.einsum('ncl,co->nol', seg, w[k])
    return out


def reference_tcn(x_ncl, params):
    x = x_ncl
    for i, layer in enumerate(params):
        d = 2 ** i
        h = jax.nn.relu(_ref_causal_conv(x, layer["w1"], layer["b1"], d))
        out = jax.nn.relu(_ref_causal_conv(h, layer["w2"], layer["b2"], d))
        res = (_ref_causal_conv(x, layer["wd"], layer["bd"], 1)
               if "wd" in layer else x)
        x = jax.nn.relu(out + res)
    return x


if __name__ == "__main__":
    key = jax.random.PRNGKey(0)
    key, xkey = jax.random.split(key)

    N, C_in, L = 2, 4, 16
    num_channels = (8, 8, 16)   # exercises downsample and identity residual paths
    kernel_size = 2

    x = jax.random.normal(xkey, (N, C_in, L), jnp.float32)   # PyTorch NCL input
    params = init_tcn_params(key, C_in, num_channels, kernel_size=kernel_size)
    padded = pad_params_for_tpu(params)

    fwd = jax.jit(lambda inp: temporal_conv_net(inp, padded, num_channels[-1],
                                                kernel_size))
    y = fwd(x)
    jax.block_until_ready(y)
    assert y.shape == (N, num_channels[-1], L), y.shape
    assert y.dtype == jnp.float32

    # Tolerance check against a pure-JAX f32 reference (bf16 MXU operands give
    # ~1e-2 relative deviation; residual/bias path stays f32).
    y_ref = reference_tcn(x, params)
    err = float(jnp.max(jnp.abs(y - y_ref)))
    assert err < 5e-2, f"max abs error vs reference: {err}"

    print("KERNEL_OK")
</pallas_src>

<mosaic_0001>
module attributes {stable_mosaic.version = 11 : i64} {
  func.func @_tcn_stack_kernel(%arg0: i32, %arg1: memref<2x16x128xf32, #tpu.memory_space<vmem>>, %arg2: memref<256x128xbf16, #tpu.memory_space<vmem>>, %arg3: memref<1x128xf32, #tpu.memory_space<vmem>>, %arg4: memref<256x128xbf16, #tpu.memory_space<vmem>>, %arg5: memref<1x128xf32, #tpu.memory_space<vmem>>, %arg6: memref<128x128xbf16, #tpu.memory_space<vmem>>, %arg7: memref<1x128xf32, #tpu.memory_space<vmem>>, %arg8: memref<256x128xbf16, #tpu.memory_space<vmem>>, %arg9: memref<1x128xf32, #tpu.memory_space<vmem>>, %arg10: memref<256x128xbf16, #tpu.memory_space<vmem>>, %arg11: memref<1x128xf32, #tpu.memory_space<vmem>>, %arg12: memref<256x128xbf16, #tpu.memory_space<vmem>>, %arg13: memref<1x128xf32, #tpu.memory_space<vmem>>, %arg14: memref<256x128xbf16, #tpu.memory_space<vmem>>, %arg15: memref<1x128xf32, #tpu.memory_space<vmem>>, %arg16: memref<128x128xbf16, #tpu.memory_space<vmem>>, %arg17: memref<1x128xf32, #tpu.memory_space<vmem>>, %arg18: memref<2x16x128xf32, #tpu.memory_space<vmem>>) attributes {dimension_semantics = [#tpu.dimension_semantics<parallel>], iteration_bounds = array<i64: 1>, scalar_prefetch = 0 : i64, scratch_operands = 0 : i64, tpu.core_type = #tpu.core_type<tc>, window_params = [{transform_indices = @transform_0, window_bounds = array<i64: 2, 16, 128>}, {pipeline_mode = #tpu.pipeline_mode<synchronous>, transform_indices = @transform_1, window_bounds = array<i64: 256, 128>}, {pipeline_mode = #tpu.pipeline_mode<synchronous>, transform_indices = @transform_2, window_bounds = array<i64: 1, 128>}, {pipeline_mode = #tpu.pipeline_mode<synchronous>, transform_indices = @transform_3, window_bounds = array<i64: 256, 128>}, {pipeline_mode = #tpu.pipeline_mode<synchronous>, transform_indices = @transform_4, window_bounds = array<i64: 1, 128>}, {pipeline_mode = #tpu.pipeline_mode<synchronous>, transform_indices = @transform_5, window_bounds = array<i64: 128, 128>}, {pipeline_mode = #tpu.pipeline_mode<synchronous>, transform_indices = @transform_6, window_bounds = array<i64: 1, 128>}, {pipeline_mode = #tpu.pipeline_mode<synchronous>, transform_indices = @transform_7, window_bounds = array<i64: 256, 128>}, {pipeline_mode = #tpu.pipeline_mode<synchronous>, transform_indices = @transform_8, window_bounds = array<i64: 1, 128>}, {pipeline_mode = #tpu.pipeline_mode<synchronous>, transform_indices = @transform_9, window_bounds = array<i64: 256, 128>}, {pipeline_mode = #tpu.pipeline_mode<synchronous>, transform_indices = @transform_10, window_bounds = array<i64: 1, 128>}, {pipeline_mode = #tpu.pipeline_mode<synchronous>, transform_indices = @transform_11, window_bounds = array<i64: 256, 128>}, {pipeline_mode = #tpu.pipeline_mode<synchronous>, transform_indices = @transform_12, window_bounds = array<i64: 1, 128>}, {pipeline_mode = #tpu.pipeline_mode<synchronous>, transform_indices = @transform_13, window_bounds = array<i64: 256, 128>}, {pipeline_mode = #tpu.pipeline_mode<synchronous>, transform_indices = @transform_14, window_bounds = array<i64: 1, 128>}, {pipeline_mode = #tpu.pipeline_mode<synchronous>, transform_indices = @transform_15, window_bounds = array<i64: 128, 128>}, {pipeline_mode = #tpu.pipeline_mode<synchronous>, transform_indices = @transform_16, window_bounds = array<i64: 1, 128>}, {transform_indices = @transform_17, window_bounds = array<i64: 2, 16, 128>}]} {
    %c0 = arith.constant 0 : index
    %c0_0 = arith.constant 0 : index
    %c0_1 = arith.constant 0 : index
    %0 = vector.load %arg1[%c0, %c0_0, %c0_1] : memref<2x16x128xf32, #tpu.memory_space<vmem>>, vector<2x16x128xf32>
    %1 = vector.shape_cast %0 : vector<2x16x128xf32> to vector<32x128xf32>
    %2 = tpu.iota {dimensions = array<i32: 0>} : vector<32x1xi32>
    %c16_i32 = arith.constant 16 : i32
    %c0_i32 = arith.constant 0 : i32
    %3 = arith.cmpi eq, %c16_i32, %c0_i32 : i32
    %c1_i32 = arith.constant 1 : i32
    %4 = arith.select %3, %c1_i32, %c16_i32 : i32
    %5 = vector.broadcast %4 : i32 to vector<32x1xi32>
    %6 = arith.remsi %2, %5 : vector<32x1xi32>
    %c0_i32_2 = arith.constant 0 : i32
    %7 = vector.broadcast %c0_i32_2 : i32 to vector<32x1xi32>
    %8 = arith.cmpi ne, %6, %7 : vector<32x1xi32>
    %c0_i32_3 = arith.constant 0 : i32
    %9 = vector.broadcast %c0_i32_3 : i32 to vector<32x1xi32>
    %10 = arith.cmpi slt, %6, %9 : vector<32x1xi32>
    %c0_i32_4 = arith.constant 0 : i32
    %11 = arith.cmpi slt, %4, %c0_i32_4 : i32
    %12 = vector.broadcast %11 : i1 to vector<32x1xi1>
    %13 = vector.broadcast %12 : vector<32x1xi1> to vector<32x1xi1>
    %14 = arith.xori %10, %13 : vector<32x1xi1>
    %15 = arith.andi %14, %8 : vector<32x1xi1>
    %16 = vector.broadcast %4 : i32 to vector<32x1xi32>
    %17 = arith.addi %6, %16 : vector<32x1xi32>
    %18 = arith.select %15, %17, %6 : vector<32x1xi1>, vector<32x1xi32>
    %c1_i32_5 = arith.constant 1 : i32
    %19 = vector.broadcast %c1_i32_5 : i32 to vector<32x1xi32>
    %20 = arith.cmpi sge, %18, %19 : vector<32x1xi32>
    %c2_i32 = arith.constant 2 : i32
    %21 = vector.broadcast %c2_i32 : i32 to vector<32x1xi32>
    %22 = arith.cmpi sge, %18, %21 : vector<32x1xi32>
    %c4_i32 = arith.constant 4 : i32
    %23 = vector.broadcast %c4_i32 : i32 to vector<32x1xi32>
    %24 = arith.cmpi sge, %18, %23 : vector<32x1xi32>
    %c1_i32_6 = arith.constant 1 : i32
    %25 = tpu.dynamic_rotate %1 by %c1_i32_6 dim 0 : vector<32x128xf32>, i32 -> vector<32x128xf32>
    %cst = arith.constant 0.000000e+00 : f32
    %26 = vector.shape_cast %20 : vector<32x1xi1> to vector<32x1xi1>
    %27 = vector.broadcast %26 : vector<32x1xi1> to vector<32x128xi1>
    %28 = vector.broadcast %cst : f32 to vector<32x128xf32>
    %29 = arith.select %27, %25, %28 : vector<32x128xi1>, vector<32x128xf32>
    %30 = tpu.concatenate %29, %1 in 1 : vector<32x128xf32>, vector<32x128xf32> -> vector<32x256xf32>
    %31 = arith.truncf %30 : vector<32x256xf32> to vector<32x256xbf16>
    %c0_7 = arith.constant 0 : index
    %c0_8 = arith.constant 0 : index
    %32 = vector.load %arg2[%c0_7, %c0_8] : memref<256x128xbf16, #tpu.memory_space<vmem>>, vector<256x128xbf16>
    %cst_9 = arith.constant dense<0.000000e+00> : vector<32x128xf32>
    %33 = tpu.matmul %31, %32, %cst_9 {dimension_numbers = #tpu.dot_dimension_numbers<[1], [0], [0], [1], [0, 0, 1, 1], [], []>} : vector<32x256xbf16>, vector<256x128xbf16>, vector<32x128xf32> -> vector<32x128xf32>
    %c0_10 = arith.constant 0 : index
    %c0_11 = arith.constant 0 : index
    %34 = vector.load %arg3[%c0_10, %c0_11] : memref<1x128xf32, #tpu.memory_space<vmem>>, vector<1x128xf32>
    %35 = vector.broadcast %34 : vector<1x128xf32> to vector<32x128xf32>
    %36 = arith.addf %33, %35 : vector<32x128xf32>
    %cst_12 = arith.constant 0.000000e+00 : f32
    %37 = vector.broadcast %cst_12 : f32 to vector<32x128xf32>
    %38 = arith.maximumf %36, %37 : vector<32x128xf32>
    %c1_i32_13 = arith.constant 1 : i32
    %39 = tpu.dynamic_rotate %38 by %c1_i32_13 dim 0 : vector<32x128xf32>, i32 -> vector<32x128xf32>
    %cst_14 = arith.constant 0.000000e+00 : f32
    %40 = vector.shape_cast %20 : vector<32x1xi1> to vector<32x1xi1>
    %41 = vector.broadcast %40 : vector<32x1xi1> to vector<32x128xi1>
    %42 = vector.broadcast %cst_14 : f32 to vector<32x128xf32>
    %43 = arith.select %41, %39, %42 : vector<32x128xi1>, vector<32x128xf32>
    %44 = tpu.concatenate %43, %38 in 1 : vector<32x128xf32>, vector<32x128xf32> -> vector<32x256xf32>
    %45 = arith.truncf %44 : vector<32x256xf32> to vector<32x256xbf16>
    %c0_15 = arith.constant 0 : index
    %c0_16 = arith.constant 0 : index
    %46 = vector.load %arg4[%c0_15, %c0_16] : memref<256x128xbf16, #tpu.memory_space<vmem>>, vector<256x128xbf16>
    %cst_17 = arith.constant dense<0.000000e+00> : vector<32x128xf32>
    %47 = tpu.matmul %45, %46, %cst_17 {dimension_numbers = #tpu.dot_dimension_numbers<[1], [0], [0], [1], [0, 0, 1, 1], [], []>} : vector<32x256xbf16>, vector<256x128xbf16>, vector<32x128xf32> -> vector<32x128xf32>
    %c0_18 = arith.constant 0 : index
    %c0_19 = arith.constant 0 : index
    %48 = vector.load %arg5[%c0_18, %c0_19] : memref<1x128xf32, #tpu.memory_space<vmem>>, vector<1x128xf32>
    %49 = vector.broadcast %48 : vector<1x128xf32> to vector<32x128xf32>
    %50 = arith.addf %47, %49 : vector<32x128xf32>
    %cst_20 = arith.constant 0.000000e+00 : f32
    %51 = vector.broadcast %cst_20 : f32 to vector<32x128xf32>
    %52 = arith.maximumf %50, %51 : vector<32x128xf32>
    %53 = arith.truncf %1 : vector<32x128xf32> to vector<32x128xbf16>
    %c0_21 = arith.constant 0 : index
    %c0_22 = arith.constant 0 : index
    %54 = vector.load %arg6[%c0_21, %c0_22] : memref<128x128xbf16, #tpu.memory_space<vmem>>, vector<128x128xbf16>
    %cst_23 = arith.constant dense<0.000000e+00> : vector<32x128xf32>
    %55 = tpu.matmul %53, %54, %cst_23 {dimension_numbers = #tpu.dot_dimension_numbers<[1], [0], [0], [1], [0, 0, 1, 1], [], []>} : vector<32x128xbf16>, vector<128x128xbf16>, vector<32x128xf32> -> vector<32x128xf32>
    %c0_24 = arith.constant 0 : index
    %c0_25 = arith.constant 0 : index
    %56 = vector.load %arg7[%c0_24, %c0_25] : memref<1x128xf32, #tpu.memory_space<vmem>>, vector<1x128xf32>
    %57 = vector.broadcast %56 : vector<1x128xf32> to vector<32x128xf32>
    %58 = arith.addf %55, %57 : vector<32x128xf32>
    %59 = arith.addf %52, %58 : vector<32x128xf32>
    %cst_26 = arith.constant 0.000000e+00 : f32
    %60 = vector.broadcast %cst_26 : f32 to vector<32x128xf32>
    %61 = arith.maximumf %59, %60 : vector<32x128xf32>
    %c2_i32_27 = arith.constant 2 : i32
    %62 = tpu.dynamic_rotate %61 by %c2_i32_27 dim 0 : vector<32x128xf32>, i32 -> vector<32x128xf32>
    %cst_28 = arith.constant 0.000000e+00 : f32
    %63 = vector.shape_cast %22 : vector<32x1xi1> to vector<32x1xi1>
    %64 = vector.broadcast %63 : vector<32x1xi1> to vector<32x128xi1>
    %65 = vector.broadcast %cst_28 : f32 to vector<32x128xf32>
    %66 = arith.select %64, %62, %65 : vector<32x128xi1>, vector<32x128xf32>
    %67 = tpu.concatenate %66, %61 in 1 : vector<32x128xf32>, vector<32x128xf32> -> vector<32x256xf32>
    %68 = arith.truncf %67 : vector<32x256xf32> to vector<32x256xbf16>
    %c0_29 = arith.constant 0 : index
    %c0_30 = arith.constant 0 : index
    %69 = vector.load %arg8[%c0_29, %c0_30] : memref<256x128xbf16, #tpu.memory_space<vmem>>, vector<256x128xbf16>
    %cst_31 = arith.constant dense<0.000000e+00> : vector<32x128xf32>
    %70 = tpu.matmul %68, %69, %cst_31 {dimension_numbers = #tpu.dot_dimension_numbers<[1], [0], [0], [1], [0, 0, 1, 1], [], []>} : vector<32x256xbf16>, vector<256x128xbf16>, vector<32x128xf32> -> vector<32x128xf32>
    %c0_32 = arith.constant 0 : index
    %c0_33 = arith.constant 0 : index
    %71 = vector.load %arg9[%c0_32, %c0_33] : memref<1x128xf32, #tpu.memory_space<vmem>>, vector<1x128xf32>
    %72 = vector.broadcast %71 : vector<1x128xf32> to vector<32x128xf32>
    %73 = arith.addf %70, %72 : vector<32x128xf32>
    %cst_34 = arith.constant 0.000000e+00 : f32
    %74 = vector.broadcast %cst_34 : f32 to vector<32x128xf32>
    %75 = arith.maximumf %73, %74 : vector<32x128xf32>
    %c2_i32_35 = arith.constant 2 : i32
    %76 = tpu.dynamic_rotate %75 by %c2_i32_35 dim 0 : vector<32x128xf32>, i32 -> vector<32x128xf32>
    %cst_36 = arith.constant 0.000000e+00 : f32
    %77 = vector.shape_cast %22 : vector<32x1xi1> to vector<32x1xi1>
    %78 = vector.broadcast %77 : vector<32x1xi1> to vector<32x128xi1>
    %79 = vector.broadcast %cst_36 : f32 to vector<32x128xf32>
    %80 = arith.select %78, %76, %79 : vector<32x128xi1>, vector<32x128xf32>
    %81 = tpu.concatenate %80, %75 in 1 : vector<32x128xf32>, vector<32x128xf32> -> vector<32x256xf32>
    %82 = arith.truncf %81 : vector<32x256xf32> to vector<32x256xbf16>
    %c0_37 = arith.constant 0 : index
    %c0_38 = arith.constant 0 : index
    %83 = vector.load %arg10[%c0_37, %c0_38] : memref<256x128xbf16, #tpu.memory_space<vmem>>, vector<256x128xbf16>
    %cst_39 = arith.constant dense<0.000000e+00> : vector<32x128xf32>
    %84 = tpu.matmul %82, %83, %cst_39 {dimension_numbers = #tpu.dot_dimension_numbers<[1], [0], [0], [1], [0, 0, 1, 1], [], []>} : vector<32x256xbf16>, vector<256x128xbf16>, vector<32x128xf32> -> vector<32x128xf32>
    %c0_40 = arith.constant 0 : index
    %c0_41 = arith.constant 0 : index
    %85 = vector.load %arg11[%c0_40, %c0_41] : memref<1x128xf32, #tpu.memory_space<vmem>>, vector<1x128xf32>
    %86 = vector.broadcast %85 : vector<1x128xf32> to vector<32x128xf32>
    %87 = arith.addf %84, %86 : vector<32x128xf32>
    %cst_42 = arith.constant 0.000000e+00 : f32
    %88 = vector.broadcast %cst_42 : f32 to vector<32x128xf32>
    %89 = arith.maximumf %87, %88 : vector<32x128xf32>
    %90 = arith.addf %89, %61 : vector<32x128xf32>
    %cst_43 = arith.constant 0.000000e+00 : f32
    %91 = vector.broadcast %cst_43 : f32 to vector<32x128xf32>
    %92 = arith.maximumf %90, %91 : vector<32x128xf32>
    %c4_i32_44 = arith.constant 4 : i32
    %93 = tpu.dynamic_rotate %92 by %c4_i32_44 dim 0 : vector<32x128xf32>, i32 -> vector<32x128xf32>
    %cst_45 = arith.constant 0.000000e+00 : f32
    %94 = vector.shape_cast %24 : vector<32x1xi1> to vector<32x1xi1>
    %95 = vector.broadcast %94 : vector<32x1xi1> to vector<32x128xi1>
    %96 = vector.broadcast %cst_45 : f32 to vector<32x128xf32>
    %97 = arith.select %95, %93, %96 : vector<32x128xi1>, vector<32x128xf32>
    %98 = tpu.concatenate %97, %92 in 1 : vector<32x128xf32>, vector<32x128xf32> -> vector<32x256xf32>
    %99 = arith.truncf %98 : vector<32x256xf32> to vector<32x256xbf16>
    %c0_46 = arith.constant 0 : index
    %c0_47 = arith.constant 0 : index
    %100 = vector.load %arg12[%c0_46, %c0_47] : memref<256x128xbf16, #tpu.memory_space<vmem>>, vector<256x128xbf16>
    %cst_48 = arith.constant dense<0.000000e+00> : vector<32x128xf32>
    %101 = tpu.matmul %99, %100, %cst_48 {dimension_numbers = #tpu.dot_dimension_numbers<[1], [0], [0], [1], [0, 0, 1, 1], [], []>} : vector<32x256xbf16>, vector<256x128xbf16>, vector<32x128xf32> -> vector<32x128xf32>
    %c0_49 = arith.constant 0 : index
    %c0_50 = arith.constant 0 : index
    %102 = vector.load %arg13[%c0_49, %c0_50] : memref<1x128xf32, #tpu.memory_space<vmem>>, vector<1x128xf32>
    %103 = vector.broadcast %102 : vector<1x128xf32> to vector<32x128xf32>
    %104 = arith.addf %101, %103 : vector<32x128xf32>
    %cst_51 = arith.constant 0.000000e+00 : f32
    %105 = vector.broadcast %cst_51 : f32 to vector<32x128xf32>
    %106 = arith.maximumf %104, %105 : vector<32x128xf32>
    %c4_i32_52 = arith.constant 4 : i32
    %107 = tpu.dynamic_rotate %106 by %c4_i32_52 dim 0 : vector<32x128xf32>, i32 -> vector<32x128xf32>
    %cst_53 = arith.constant 0.000000e+00 : f32
    %108 = vector.shape_cast %24 : vector<32x1xi1> to vector<32x1xi1>
    %109 = vector.broadcast %108 : vector<32x1xi1> to vector<32x128xi1>
    %110 = vector.broadcast %cst_53 : f32 to vector<32x128xf32>
    %111 = arith.select %109, %107, %110 : vector<32x128xi1>, vector<32x128xf32>
    %112 = tpu.concatenate %111, %106 in 1 : vector<32x128xf32>, vector<32x128xf32> -> vector<32x256xf32>
    %113 = arith.truncf %112 : vector<32x256xf32> to vector<32x256xbf16>
    %c0_54 = arith.constant 0 : index
    %c0_55 = arith.constant 0 : index
    %114 = vector.load %arg14[%c0_54, %c0_55] : memref<256x128xbf16, #tpu.memory_space<vmem>>, vector<256x128xbf16>
    %cst_56 = arith.constant dense<0.000000e+00> : vector<32x128xf32>
    %115 = tpu.matmul %113, %114, %cst_56 {dimension_numbers = #tpu.dot_dimension_numbers<[1], [0], [0], [1], [0, 0, 1, 1], [], []>} : vector<32x256xbf16>, vector<256x128xbf16>, vector<32x128xf32> -> vector<32x128xf32>
    %c0_57 = arith.constant 0 : index
    %c0_58 = arith.constant 0 : index
    %116 = vector.load %arg15[%c0_57, %c0_58] : memref<1x128xf32, #tpu.memory_space<vmem>>, vector<1x128xf32>
    %117 = vector.broadcast %116 : vector<1x128xf32> to vector<32x128xf32>
    %118 = arith.addf %115, %117 : vector<32x128xf32>
    %cst_59 = arith.constant 0.000000e+00 : f32
    %119 = vector.broadcast %cst_59 : f32 to vector<32x128xf32>
    %120 = arith.maximumf %118, %119 : vector<32x128xf32>
    %121 = arith.truncf %92 : vector<32x128xf32> to vector<32x128xbf16>
    %c0_60 = arith.constant 0 : index
    %c0_61 = arith.constant 0 : index
    %122 = vector.load %arg16[%c0_60, %c0_61] : memref<128x128xbf16, #tpu.memory_space<vmem>>, vector<128x128xbf16>
    %cst_62 = arith.constant dense<0.000000e+00> : vector<32x128xf32>
    %123 = tpu.matmul %121, %122, %cst_62 {dimension_numbers = #tpu.dot_dimension_numbers<[1], [0], [0], [1], [0, 0, 1, 1], [], []>} : vector<32x128xbf16>, vector<128x128xbf16>, vector<32x128xf32> -> vector<32x128xf32>
    %c0_63 = arith.constant 0 : index
    %c0_64 = arith.constant 0 : index
    %124 = vector.load %arg17[%c0_63, %c0_64] : memref<1x128xf32, #tpu.memory_space<vmem>>, vector<1x128xf32>
    %125 = vector.broadcast %124 : vector<1x128xf32> to vector<32x128xf32>
    %126 = arith.addf %123, %125 : vector<32x128xf32>
    %127 = arith.addf %120, %126 : vector<32x128xf32>
    %cst_65 = arith.constant 0.000000e+00 : f32
    %128 = vector.broadcast %cst_65 : f32 to vector<32x128xf32>
    %129 = arith.maximumf %127, %128 : vector<32x128xf32>
    %130 = vector.shape_cast %129 : vector<32x128xf32> to vector<2x16x128xf32>
    %c0_66 = arith.constant 0 : index
    %c0_67 = arith.constant 0 : index
    %c0_68 = arith.constant 0 : index
    %131 = vector.load %arg18[%c0_66, %c0_67, %c0_68] : memref<2x16x128xf32, #tpu.memory_space<vmem>>, vector<2x16x128xf32>
    tpu.vector_store %arg18[%c0_66, %c0_67, %c0_68], %130 {strides = array<i32>} : memref<2x16x128xf32, #tpu.memory_space<vmem>>, vector<2x16x128xf32>,
    return
  }
  func.func @transform_0(%arg0: i32) -> (i32, i32, i32) {
    %c0_i32 = arith.constant 0 : i32
    %c0_i32_0 = arith.constant 0 : i32
    %c0_i32_1 = arith.constant 0 : i32
    return %arg0, %c0_i32, %c0_i32_0 : i32, i32, i32
  }
  func.func @transform_1(%arg0: i32) -> (i32, i32) {
    %c0_i32 = arith.constant 0 : i32
    %c0_i32_0 = arith.constant 0 : i32
    %c0_i32_1 = arith.constant 0 : i32
    return %c0_i32, %c0_i32_0 : i32, i32
  }
  func.func @transform_2(%arg0: i32) -> (i32, i32) {
    %c0_i32 = arith.constant 0 : i32
    %c0_i32_0 = arith.constant 0 : i32
    %c0_i32_1 = arith.constant 0 : i32
    return %c0_i32, %c0_i32_0 : i32, i32
  }
  func.func @transform_3(%arg0: i32) -> (i32, i32) {
    %c0_i32 = arith.constant 0 : i32
    %c0_i32_0 = arith.constant 0 : i32
    %c0_i32_1 = arith.constant 0 : i32
    return %c0_i32, %c0_i32_0 : i32, i32
  }
  func.func @transform_4(%arg0: i32) -> (i32, i32) {
    %c0_i32 = arith.constant 0 : i32
    %c0_i32_0 = arith.constant 0 : i32
    %c0_i32_1 = arith.constant 0 : i32
    return %c0_i32, %c0_i32_0 : i32, i32
  }
  func.func @transform_5(%arg0: i32) -> (i32, i32) {
    %c0_i32 = arith.constant 0 : i32
    %c0_i32_0 = arith.constant 0 : i32
    %c0_i32_1 = arith.constant 0 : i32
    return %c0_i32, %c0_i32_0 : i32, i32
  }
  func.func @transform_6(%arg0: i32) -> (i32, i32) {
    %c0_i32 = arith.constant 0 : i32
    %c0_i32_0 = arith.constant 0 : i32
    %c0_i32_1 = arith.constant 0 : i32
    return %c0_i32, %c0_i32_0 : i32, i32
  }
  func.func @transform_7(%arg0: i32) -> (i32, i32) {
    %c0_i32 = arith.constant 0 : i32
    %c0_i32_0 = arith.constant 0 : i32
    %c0_i32_1 = arith.constant 0 : i32
    return %c0_i32, %c0_i32_0 : i32, i32
  }
  func.func @transform_8(%arg0: i32) -> (i32, i32) {
    %c0_i32 = arith.constant 0 : i32
    %c0_i32_0 = arith.constant 0 : i32
    %c0_i32_1 = arith.constant 0 : i32
    return %c0_i32, %c0_i32_0 : i32, i32
  }
  func.func @transform_9(%arg0: i32) -> (i32, i32) {
    %c0_i32 = arith.constant 0 : i32
    %c0_i32_0 = arith.constant 0 : i32
    %c0_i32_1 = arith.constant 0 : i32
    return %c0_i32, %c0_i32_0 : i32, i32
  }
  func.func @transform_10(%arg0: i32) -> (i32, i32) {
    %c0_i32 = arith.constant 0 : i32
    %c0_i32_0 = arith.constant 0 : i32
    %c0_i32_1 = arith.constant 0 : i32
    return %c0_i32, %c0_i32_0 : i32, i32
  }
  func.func @transform_11(%arg0: i32) -> (i32, i32) {
    %c0_i32 = arith.constant 0 : i32
    %c0_i32_0 = arith.constant 0 : i32
    %c0_i32_1 = arith.constant 0 : i32
    return %c0_i32, %c0_i32_0 : i32, i32
  }
  func.func @transform_12(%arg0: i32) -> (i32, i32) {
    %c0_i32 = arith.constant 0 : i32
    %c0_i32_0 = arith.constant 0 : i32
    %c0_i32_1 = arith.constant 0 : i32
    return %c0_i32, %c0_i32_0 : i32, i32
  }
  func.func @transform_13(%arg0: i32) -> (i32, i32) {
    %c0_i32 = arith.constant 0 : i32
    %c0_i32_0 = arith.constant 0 : i32
    %c0_i32_1 = arith.constant 0 : i32
    return %c0_i32, %c0_i32_0 : i32, i32
  }
  func.func @transform_14(%arg0: i32) -> (i32, i32) {
    %c0_i32 = arith.constant 0 : i32
    %c0_i32_0 = arith.constant 0 : i32
    %c0_i32_1 = arith.constant 0 : i32
    return %c0_i32, %c0_i32_0 : i32, i32
  }
  func.func @transform_15(%arg0: i32) -> (i32, i32) {
    %c0_i32 = arith.constant 0 : i32
    %c0_i32_0 = arith.constant 0 : i32
    %c0_i32_1 = arith.constant 0 : i32
    return %c0_i32, %c0_i32_0 : i32, i32
  }
  func.func @transform_16(%arg0: i32) -> (i32, i32) {
    %c0_i32 = arith.constant 0 : i32
    %c0_i32_0 = arith.constant 0 : i32
    %c0_i32_1 = arith.constant 0 : i32
    return %c0_i32, %c0_i32_0 : i32, i32
  }
  func.func @transform_17(%arg0: i32) -> (i32, i32, i32) {
    %c0_i32 = arith.constant 0 : i32
    %c0_i32_0 = arith.constant 0 : i32
    %c0_i32_1 = arith.constant 0 : i32
    return %arg0, %c0_i32, %c0_i32_0 : i32, i32, i32
  }
}

</mosaic_0001>

<llo_original>
// kernel: _lambda_.1
$region0: #{_lambda_.1}
  #allocation0 [shape = 'u32[]', space=smem, size = 0x4, offset = 0x4, fixed_abs, tag = 'smem constant byte address 0x4 - core index']
  #allocation1 [shape = 'u32[144,128]{1,0:T(1,128)}', space=vmem, size = 0x12000, scoped, tag = 'internal scratch']
  %s0 = inlined_call_operand.vmem [shape: f32[2,16,128], index: 0, kind: input, shape index: {}]
  %s1 = inlined_call_operand.hbm [shape: bf16[256,128], index: 1, kind: input, shape index: {}]
  %s2 = inlined_call_operand.hbm [shape: f32[1,128], index: 2, kind: input, shape index: {}]
  %s3 = inlined_call_operand.hbm [shape: bf16[256,128], index: 3, kind: input, shape index: {}]
  %s4 = inlined_call_operand.vmem [shape: f32[1,128], index: 4, kind: input, shape index: {}]
  %s5 = inlined_call_operand.hbm [shape: bf16[128,128], index: 5, kind: input, shape index: {}]
  %s6 = inlined_call_operand.vmem [shape: f32[1,128], index: 6, kind: input, shape index: {}]
  %s7 = inlined_call_operand.hbm [shape: bf16[256,128], index: 7, kind: input, shape index: {}]
  %s8 = inlined_call_operand.vmem [shape: f32[1,128], index: 8, kind: input, shape index: {}]
  %s9 = inlined_call_operand.hbm [shape: bf16[256,128], index: 9, kind: input, shape index: {}]
  %s10 = inlined_call_operand.vmem [shape: f32[1,128], index: 10, kind: input, shape index: {}]
  %s11 = inlined_call_operand.hbm [shape: bf16[256,128], index: 11, kind: input, shape index: {}]
  %s12 = inlined_call_operand.vmem [shape: f32[1,128], index: 12, kind: input, shape index: {}]
  %s13 = inlined_call_operand.vmem [shape: bf16[256,128], index: 13, kind: input, shape index: {}]
  %s14 = inlined_call_operand.vmem [shape: f32[1,128], index: 14, kind: input, shape index: {}]
  %s15 = inlined_call_operand.vmem [shape: bf16[128,128], index: 15, kind: input, shape index: {}]
  %s16 = inlined_call_operand.vmem [shape: f32[1,128], index: 16, kind: input, shape index: {}]
  %s17 = inlined_call_operand.vmem [shape: f32[2,16,128], index: 17, kind: output, shape index: {}]
  %s18 = sld [smem:[#allocation0]]
  $region106: #{_lambda_.1} parent=0
    _
  %s20 = ssub.s32 1, %s18
  %s21 = scalar_select 0, %s20, %s18
  $region1: #{_lambda_.1} parent=0
    #allocation2 [shape = 'u8[65536]{0}', space=vmem, size = 0x10000, scoped, tag = 'input window, operand 1, single buffered']
    #allocation3 [shape = 's32[1]{0}', space=sflag, size = 0x4, scoped, tag = 'scoped memory for _lambda_.1']
    #allocation4 [shape = 'u8[512]{0}', space=vmem, size = 0x400, scoped, tag = 'input window, operand 2, single buffered']
    #allocation5 [shape = 's32[1]{0}', space=sflag, size = 0x4, scoped, tag = 'scoped memory for _lambda_.1']
    #allocation6 [shape = 'u8[65536]{0}', space=vmem, size = 0x10000, scoped, tag = 'input window, operand 3, single buffered']
    #allocation7 [shape = 'u8[32768]{0}', space=vmem, size = 0x8000, scoped, tag = 'input window, operand 5, single buffered']
    #allocation8 [shape = 's32[1]{0}', space=sflag, size = 0x4, scoped, tag = 'scoped memory for _lambda_.1']
    #allocation9 [shape = 'u8[65536]{0}', space=vmem, size = 0x10000, scoped, tag = 'input window, operand 7, single buffered']
    #allocation10 [shape = 'u8[65536]{0}', space=vmem, size = 0x10000, scoped, tag = 'input window, operand 9, single buffered']
    #allocation11 [shape = 's32[1]{0}', space=sflag, size = 0x4, scoped, tag = 'scoped memory for _lambda_.1']
    #allocation12 [shape = 'u8[65536]{0}', space=vmem, size = 0x10000, scoped, tag = 'input window, operand 11, single buffered']
    %22 = vsyncpa [#allocation3], 0
    %23 = vsyncpa [#allocation5], 0
    %24 = vsyncpa [#allocation8], 0
    %25 = vsyncpa [#allocation11], 0
    // Predicated region
    $region2: #{_lambda_.1} parent=1 // pred_check
      _
    $region3: #{_lambda_.1} parent=1 // pred_check_branch
      %27 = sbr.rel (0) target = $region5
    $region4: #{_lambda_.1} parent=1 // pred_region
      _
    $region5: #{_lambda_.1} parent=1 // pred_fallthru
      _
    // Predicated region
    $region6: #{_lambda_.1} parent=1 // pred_check
      _
    $region7: #{_lambda_.1} parent=1 // pred_check_branch
      %29 = sbr.rel (0) target = $region9
    $region8: #{_lambda_.1} parent=1 // pred_region
      %s31 = ssub.s32 2048, 2048
      %32 = vsyncadd [#allocation3], %s31
      %s33 = sshll.u32 [#allocation2], 4
      %s34 = int_to_ptr.vmem [resolvable:$true] %s33
      %39 = dma.hbm_to_vmem [thread:$0]  %s1, 2048, %s34, [#allocation3], 64, 64, 4
    $region9: #{_lambda_.1} parent=1 // pred_fallthru
      _
    // Predicated region
    $region10: #{_lambda_.1} parent=1 // pred_check
      _
    $region11: #{_lambda_.1} parent=1 // pred_check_branch
      %41 = sbr.rel (0) target = $region13
    $region12: #{_lambda_.1} parent=1 // pred_region
      %s43 = ssub.s32 16, 16
      %44 = vsyncadd [#allocation5], %s43
      %s46 = sshll.u32 [#allocation4], 4
      %s47 = int_to_ptr.vmem [resolvable:$true] %s46
      %49 = dma.hbm_to_vmem [thread:$0]  %s2, 16, %s47, [#allocation5]
    $region13: #{_lambda_.1} parent=1 // pred_fallthru
      _
    // Predicated region
    $region14: #{_lambda_.1} parent=1 // pred_check
      _
    $region15: #{_lambda_.1} parent=1 // pred_check_branch
      %51 = sbr.rel (0) target = $region17
    $region16: #{_lambda_.1} parent=1 // pred_region
      %s53 = ssub.s32 2048, 2048
      %54 = vsyncadd [#allocation5], %s53
      %s55 = sshll.u32 [#allocation6], 4
      %s56 = int_to_ptr.vmem [resolvable:$true] %s55
      %61 = dma.hbm_to_vmem [thread:$0]  %s3, 2048, %s56, [#allocation5], 64, 64, 4
    $region17: #{_lambda_.1} parent=1 // pred_fallthru
      _
    // Predicated region
    $region18: #{_lambda_.1} parent=1 // pred_check
      _
    $region19: #{_lambda_.1} parent=1 // pred_check_branch
      %63 = sbr.rel (0) target = $region21
    $region20: #{_lambda_.1} parent=1 // pred_region
      _
    $region21: #{_lambda_.1} parent=1 // pred_fallthru
      _
    // Predicated region
    $region22: #{_lambda_.1} parent=1 // pred_check
      _
    $region23: #{_lambda_.1} parent=1 // pred_check_branch
      %65 = sbr.rel (0) target = $region25
    $region24: #{_lambda_.1} parent=1 // pred_region
      %s67 = ssub.s32 1024, 1024
      %68 = vsyncadd [#allocation8], %s67
      %s69 = sshll.u32 [#allocation7], 4
      %s70 = int_to_ptr.vmem [resolvable:$true] %s69
      %75 = dma.hbm_to_vmem [thread:$0]  %s5, 1024, %s70, [#allocation8], 64, 64, 4
    $region25: #{_lambda_.1} parent=1 // pred_fallthru
      _
    // Predicated region
    $region26: #{_lambda_.1} parent=1 // pred_check
      _
    $region27: #{_lambda_.1} parent=1 // pred_check_branch
      %77 = sbr.rel (0) target = $region29
    $region28: #{_lambda_.1} parent=1 // pred_region
      _
    $region29: #{_lambda_.1} parent=1 // pred_fallthru
      _
    // Predicated region
    $region30: #{_lambda_.1} parent=1 // pred_check
      _
    $region31: #{_lambda_.1} parent=1 // pred_check_branch
      %79 = sbr.rel (0) target = $region33
    $region32: #{_lambda_.1} parent=1 // pred_region
      %s81 = ssub.s32 2048, 2048
      %82 = vsyncadd [#allocation8], %s81
      %s83 = sshll.u32 [#allocation9], 4
      %s84 = int_to_ptr.vmem [resolvable:$true] %s83
      %89 = dma.hbm_to_vmem [thread:$0]  %s7, 2048, %s84, [#allocation8], 64, 64, 4
    $region33: #{_lambda_.1} parent=1 // pred_fallthru
      _
    // Predicated region
    $region34: #{_lambda_.1} parent=1 // pred_check
      _
    $region35: #{_lambda_.1} parent=1 // pred_check_branch
      %91 = sbr.rel (0) target = $region37
    $region36: #{_lambda_.1} parent=1 // pred_region
      _
    $region37: #{_lambda_.1} parent=1 // pred_fallthru
      _
    // Predicated region
    $region38: #{_lambda_.1} parent=1 // pred_check
      _
    $region39: #{_lambda_.1} parent=1 // pred_check_branch
      %93 = sbr.rel (0) target = $region41
    $region40: #{_lambda_.1} parent=1 // pred_region
      %s95 = ssub.s32 2048, 2048
      %96 = vsyncadd [#allocation11], %s95
      %s97 = sshll.u32 [#allocation10], 4
      %s98 = int_to_ptr.vmem [resolvable:$true] %s97
      %103 = dma.hbm_to_vmem [thread:$0]  %s9, 2048, %s98, [#allocation11], 64, 64, 4
    $region41: #{_lambda_.1} parent=1 // pred_fallthru
      _
    // Predicated region
    $region42: #{_lambda_.1} parent=1 // pred_check
      _
    $region43: #{_lambda_.1} parent=1 // pred_check_branch
      %105 = sbr.rel (0) target = $region45
    $region44: #{_lambda_.1} parent=1 // pred_region
      _
    $region45: #{_lambda_.1} parent=1 // pred_fallthru
      _
    // Predicated region
    $region46: #{_lambda_.1} parent=1 // pred_check
      _
    $region47: #{_lambda_.1} parent=1 // pred_check_branch
      %107 = sbr.rel (0) target = $region49
    $region48: #{_lambda_.1} parent=1 // pred_region
      %s109 = ssub.s32 2048, 2048
      %110 = vsyncadd [#allocation11], %s109
      %s111 = sshll.u32 [#allocation12], 4
      %s112 = int_to_ptr.vmem [resolvable:$true] %s111
      %117 = dma.hbm_to_vmem [thread:$0]  %s11, 2048, %s112, [#allocation11], 64, 64, 4
    $region49: #{_lambda_.1} parent=1 // pred_fallthru
      _
    // Predicated region
    $region50: #{_lambda_.1} parent=1 // pred_check
      _
    $region51: #{_lambda_.1} parent=1 // pred_check_branch
      %119 = sbr.rel (0) target = $region53
    $region52: #{_lambda_.1} parent=1 // pred_region
      _
    $region53: #{_lambda_.1} parent=1 // pred_fallthru
      _
    // Predicated region
    $region54: #{_lambda_.1} parent=1 // pred_check
      _
    $region55: #{_lambda_.1} parent=1 // pred_check_branch
      %121 = sbr.rel (0) target = $region57
    $region56: #{_lambda_.1} parent=1 // pred_region
      _
    $region57: #{_lambda_.1} parent=1 // pred_fallthru
      _
    // Predicated region
    $region58: #{_lambda_.1} parent=1 // pred_check
      _
    $region59: #{_lambda_.1} parent=1 // pred_check_branch
      %123 = sbr.rel (0) target = $region61
    $region60: #{_lambda_.1} parent=1 // pred_region
      _
    $region61: #{_lambda_.1} parent=1 // pred_fallthru
      _
    // Predicated region
    $region62: #{_lambda_.1} parent=1 // pred_check
      _
    $region63: #{_lambda_.1} parent=1 // pred_check_branch
      %125 = sbr.rel (0) target = $region65
    $region64: #{_lambda_.1} parent=1 // pred_region
      _
    $region65: #{_lambda_.1} parent=1 // pred_fallthru
      _
    // Predicated region
    $region66: #{_lambda_.1} parent=1 // pred_check
      _
    $region67: #{_lambda_.1} parent=1 // pred_check_branch
      %127 = sbr.rel (0) target = $region69
    $region68: #{_lambda_.1} parent=1 // pred_region
      _
    $region69: #{_lambda_.1} parent=1 // pred_fallthru
      _
    // Predicated region
    $region70: #{_lambda_.1} parent=1 // pred_check
      _
    $region71: #{_lambda_.1} parent=1 // pred_check_branch
      %129 = sbr.rel (0) target = $region73
    $region72: #{_lambda_.1} parent=1 // pred_region
      %130 = dma.done [#allocation3], 2048
    $region73: #{_lambda_.1} parent=1 // pred_fallthru
      _
    // Predicated region
    $region74: #{_lambda_.1} parent=1 // pred_check
      _
    $region75: #{_lambda_.1} parent=1 // pred_check_branch
      %132 = sbr.rel (0) target = $region77
    $region76: #{_lambda_.1} parent=1 // pred_region
      %133 = dma.done [#allocation5], 16
    $region77: #{_lambda_.1} parent=1 // pred_fallthru
      _
    // Predicated region
    $region78: #{_lambda_.1} parent=1 // pred_check
      _
    $region79: #{_lambda_.1} parent=1 // pred_check_branch
      %135 = sbr.rel (0) target = $region81
    $region80: #{_lambda_.1} parent=1 // pred_region
      %136 = dma.done [#allocation5], 2048
    $region81: #{_lambda_.1} parent=1 // pred_fallthru
      _
    // Predicated region
    $region82: #{_lambda_.1} parent=1 // pred_check
      _
    $region83: #{_lambda_.1} parent=1 // pred_check_branch
      %138 = sbr.rel (0) target = $region85
    $region84: #{_lambda_.1} parent=1 // pred_region
      %139 = dma.done [#allocation8], 1024
    $region85: #{_lambda_.1} parent=1 // pred_fallthru
      _
    // Predicated region
    $region86: #{_lambda_.1} parent=1 // pred_check
      _
    $region87: #{_lambda_.1} parent=1 // pred_check_branch
      %141 = sbr.rel (0) target = $region89
    $region88: #{_lambda_.1} parent=1 // pred_region
      %142 = dma.done [#allocation8], 2048
    $region89: #{_lambda_.1} parent=1 // pred_fallthru
      _
    // Predicated region
    $region90: #{_lambda_.1} parent=1 // pred_check
      _
    $region91: #{_lambda_.1} parent=1 // pred_check_branch
      %144 = sbr.rel (0) target = $region93
    $region92: #{_lambda_.1} parent=1 // pred_region
      %145 = dma.done [#allocation11], 2048
    $region93: #{_lambda_.1} parent=1 // pred_fallthru
      _
    // Predicated region
    $region94: #{_lambda_.1} parent=1 // pred_check
      _
    $region95: #{_lambda_.1} parent=1 // pred_check_branch
      %147 = sbr.rel (0) target = $region97
    $region96: #{_lambda_.1} parent=1 // pred_region
      %148 = dma.done [#allocation11], 2048
    $region97: #{_lambda_.1} parent=1 // pred_fallthru
      _
    %v150 = vld [vmem:[%s0] sm:$0xff]
    %v151 = vld [vmem:[%s0 + $0x8] sm:$0xff]
    %v152 = vld [vmem:[%s0 + $0x10] sm:$0xff]
    %v153 = vld [vmem:[%s0 + $0x18] sm:$0xff]
    %v154 = vlaneseq
    %v155 = vshrl.u32 %v154, 7
    %v156 = vadd.s32 %v155, 8
    %v157 = vadd.s32 %v155, 16
    %v158 = vadd.s32 %v155, 24
    %vm159 = vcmp.lt.s32.totalorder %v155, 0
    %v160 = vsub.s32 0, %v155
    %v161 = vsel %vm159, %v160, %v155
    %v162 = vshrl.u32 %v161, 4
    %v163 = vand.u32 %v161, 15
    %v164 = vsub.s32 0, %v163
    %v165 = vsel %vm159, %v164, %v163
    %vm166 = vcmp.lt.s32.totalorder %v156, 0
    %v167 = vsub.s32 0, %v156
    %v168 = vsel %vm166, %v167, %v156
    %v169 = vshrl.u32 %v168, 4
    %v170 = vand.u32 %v168, 15
    %v171 = vsub.s32 0, %v170
    %v172 = vsel %vm166, %v171, %v170
    %vm173 = vcmp.lt.s32.totalorder %v157, 0
    %v174 = vsub.s32 0, %v157
    %v175 = vsel %vm173, %v174, %v157
    %v176 = vshrl.u32 %v175, 4
    %v177 = vand.u32 %v175, 15
    %v178 = vsub.s32 0, %v177
    %v179 = vsel %vm173, %v178, %v177
    %vm180 = vcmp.lt.s32.totalorder %v158, 0
    %v181 = vsub.s32 0, %v158
    %v182 = vsel %vm180, %v181, %v158
    %v183 = vshrl.u32 %v182, 4
    %v184 = vand.u32 %v182, 15
    %v185 = vsub.s32 0, %v184
    %v186 = vsel %vm180, %v185, %v184
    %vm187 = vcmp.ne.s32.totalorder %v165, 0
    %vm188 = vcmp.ne.s32.totalorder %v172, 0
    %vm189 = vcmp.ne.s32.totalorder %v179, 0
    %vm190 = vcmp.ne.s32.totalorder %v186, 0
    %vm191 = vcmp.lt.s32.totalorder %v165, 0
    %vm192 = vcmp.lt.s32.totalorder %v172, 0
    %vm193 = vcmp.lt.s32.totalorder %v179, 0
    %vm194 = vcmp.lt.s32.totalorder %v186, 0
    %vm195 = vmand %vm191, %vm187
    %vm196 = vmand %vm192, %vm188
    %vm197 = vmand %vm193, %vm189
    %vm198 = vmand %vm194, %vm190
    %v199 = vadd.s32 %v165, 16
    %v200 = vadd.s32 %v172, 16
    %v201 = vadd.s32 %v179, 16
    %v202 = vadd.s32 %v186, 16
    %v203 = vsel %vm195, %v199, %v165
    %v204 = vsel %vm196, %v200, %v172
    %v205 = vsel %vm197, %v201, %v179
    %v206 = vsel %vm198, %v202, %v186
    %vm207 = vcmp.ge.s32.totalorder %v203, 1
    %vm208 = vcmp.ge.s32.totalorder %v204, 1
    %vm209 = vcmp.ge.s32.totalorder %v205, 1
    %vm210 = vcmp.ge.s32.totalorder %v206, 1
    %vm211 = vcmp.ge.s32.totalorder %v203, 2
    %vm212 = vcmp.ge.s32.totalorder %v204, 2
    %vm213 = vcmp.ge.s32.totalorder %v205, 2
    %vm214 = vcmp.ge.s32.totalorder %v206, 2
    %vm215 = vcmp.ge.s32.totalorder %v203, 4
    %vm216 = vcmp.ge.s32.totalorder %v204, 4
    %vm217 = vcmp.ge.s32.totalorder %v205, 4
    %vm218 = vcmp.ge.s32.totalorder %v206, 4
    %v219 = vrot.slane %v150, 7
    %v220 = vrot.slane %v151, 7
    %v221 = vrot.slane %v152, 7
    %v222 = vrot.slane %v153, 7
    %vm223 = vcmp.lt.s32.totalorder %v155, 1
    %v224 = vsel %vm223, %v221, %v222
    %v225 = vsel %vm223, %v220, %v221
    %v226 = vsel %vm223, %v219, %v220
    %v227 = vsel %vm223, %v222, %v219
    %v228 = vsel %vm207, 1, 0
    %v229 = vsel %vm208, 1, 0
    %v230 = vsel %vm209, 1, 0
    %v231 = vsel %vm210, 1, 0
    %vm232 = vcmp.eq.s32.totalorder %v228, 1
    %vm233 = vcmp.eq.s32.totalorder %v229, 1
    %vm234 = vcmp.eq.s32.totalorder %v230, 1
    %vm235 = vcmp.eq.s32.totalorder %v231, 1
    %v236 = vsel %vm232, %v227, 0.0
    %v237 = vsel %vm233, %v226, 0.0
    %v238 = vsel %vm234, %v225, 0.0
    %v239 = vsel %vm235, %v224, 0.0
    %v240 = vpack.c.bf16 %v237, %v236
    %v241 = vpack.c.bf16 %v151, %v150
    %v242 = vpack.c.bf16 %v239, %v238
    %v243 = vpack.c.bf16 %v153, %v152
    %v244 = vld [vmem:[#allocation2] sm:$0xf]
    %v245 = vld [vmem:[#allocation2 + $0x4] sm:$0xf]
    %v246 = vld [vmem:[#allocation2 + $0x8] sm:$0xf]
    %v247 = vld [vmem:[#allocation2 + $0xc] sm:$0xf]
    %v248 = vld [vmem:[#allocation2 + $0x10] sm:$0xf]
    %v249 = vld [vmem:[#allocation2 + $0x14] sm:$0xf]
    %v250 = vld [vmem:[#allocation2 + $0x18] sm:$0xf]
    %v251 = vld [vmem:[#allocation2 + $0x1c] sm:$0xf]
    %v252 = vld [vmem:[#allocation2 + $0x20] sm:$0xf]
    %v253 = vld [vmem:[#allocation2 + $0x24] sm:$0xf]
    %v254 = vld [vmem:[#allocation2 + $0x28] sm:$0xf]
    %v255 = vld [vmem:[#allocation2 + $0x2c] sm:$0xf]
    %v256 = vld [vmem:[#allocation2 + $0x30] sm:$0xf]
    %v257 = vld [vmem:[#allocation2 + $0x34] sm:$0xf]
    %v258 = vld [vmem:[#allocation2 + $0x38] sm:$0xf]
    %v259 = vld [vmem:[#allocation2 + $0x3c] sm:$0xf]
    %v260 = vld [vmem:[#allocation2 + $0x40] sm:$0xf]
    %v261 = vld [vmem:[#allocation2 + $0x44] sm:$0xf]
    %v262 = vld [vmem:[#allocation2 + $0x48] sm:$0xf]
    %v263 = vld [vmem:[#allocation2 + $0x4c] sm:$0xf]
    %v264 = vld [vmem:[#allocation2 + $0x50] sm:$0xf]
    %v265 = vld [vmem:[#allocation2 + $0x54] sm:$0xf]
    %v266 = vld [vmem:[#allocation2 + $0x58] sm:$0xf]
    %v267 = vld [vmem:[#allocation2 + $0x5c] sm:$0xf]
    %v268 = vld [vmem:[#allocation2 + $0x60] sm:$0xf]
    %v269 = vld [vmem:[#allocation2 + $0x64] sm:$0xf]
    %v270 = vld [vmem:[#allocation2 + $0x68] sm:$0xf]
    %v271 = vld [vmem:[#allocation2 + $0x6c] sm:$0xf]
    %v272 = vld [vmem:[#allocation2 + $0x70] sm:$0xf]
    %v273 = vld [vmem:[#allocation2 + $0x74] sm:$0xf]
    %v274 = vld [vmem:[#allocation2 + $0x78] sm:$0xf]
    %v275 = vld [vmem:[#allocation2 + $0x7c] sm:$0xf]
    %v276 = vld [vmem:[#allocation4] sm:$0x1]
    %v278 = vlaneseq
    %v279 = vshrl.u32 %v278, 7
    %v280 = vsub.s32 0, %v279
    %v281 = vrot.slane %v276, %v280
    %v315 = vunpack.c.l.b16 %v244
    %v316 = vunpack.c.l.b16 %v245
    %v317 = vunpack.c.l.b16 %v246
    %v318 = vunpack.c.l.b16 %v247
    %v319 = vunpack.c.l.b16 %v248
    %v320 = vunpack.c.l.b16 %v249
    %v321 = vunpack.c.l.b16 %v250
    %v322 = vunpack.c.l.b16 %v251
    %v323 = vunpack.c.l.b16 %v252
    %v324 = vunpack.c.l.b16 %v253
    %v325 = vunpack.c.l.b16 %v254
    %v326 = vunpack.c.l.b16 %v255
    %v327 = vunpack.c.l.b16 %v256
    %v328 = vunpack.c.l.b16 %v257
    %v329 = vunpack.c.l.b16 %v258
    %v330 = vunpack.c.l.b16 %v259
    %v331 = vunpack.c.l.b16 %v260
    %v332 = vunpack.c.l.b16 %v261
    %v333 = vunpack.c.l.b16 %v262
    %v334 = vunpack.c.l.b16 %v263
    %v335 = vunpack.c.l.b16 %v264
    %v336 = vunpack.c.l.b16 %v265
    %v337 = vunpack.c.l.b16 %v266
    %v338 = vunpack.c.l.b16 %v267
    %v339 = vunpack.c.l.b16 %v268
    %v340 = vunpack.c.l.b16 %v269
    %v341 = vunpack.c.l.b16 %v270
    %v342 = vunpack.c.l.b16 %v271
    %v343 = vunpack.c.l.b16 %v272
    %v344 = vunpack.c.l.b16 %v273
    %v345 = vunpack.c.l.b16 %v274
    %v346 = vunpack.c.l.b16 %v275
    %v347 = vpack.c.b16 %v316, %v315
    %v348 = vpack.c.b16 %v318, %v317
    %v349 = vpack.c.b16 %v320, %v319
    %v350 = vpack.c.b16 %v322, %v321
    %v351 = vpack.c.b16 %v324, %v323
    %v352 = vpack.c.b16 %v326, %v325
    %v353 = vpack.c.b16 %v328, %v327
    %v354 = vpack.c.b16 %v330, %v329
    %v355 = vpack.c.b16 %v332, %v331
    %v356 = vpack.c.b16 %v334, %v333
    %v357 = vpack.c.b16 %v336, %v335
    %v358 = vpack.c.b16 %v338, %v337
    %v359 = vpack.c.b16 %v340, %v339
    %v360 = vpack.c.b16 %v342, %v341
    %v361 = vpack.c.b16 %v344, %v343
    %v362 = vpack.c.b16 %v346, %v345
    %379 = vmatprep.subr.bf16.mxu0 0
    %380 = vmatpush1.bf16.msra.mxu0 %v347
    %381 = vmatprep.subr.bf16.mxu0 0
    %382 = vmatpush1.bf16.msra.mxu0 %v348
    %383 = vmatprep.subr.bf16.mxu0 0
    %384 = vmatpush1.bf16.msra.mxu0 %v349
    %385 = vmatprep.subr.bf16.mxu0 0
    %386 = vmatpush1.bf16.msra.mxu0 %v350
    %387 = vmatprep.subr.bf16.mxu0 0
    %388 = vmatpush1.bf16.msra.mxu0 %v351
    %389 = vmatprep.subr.bf16.mxu0 0
    %390 = vmatpush1.bf16.msra.mxu0 %v352
    %391 = vmatprep.subr.bf16.mxu0 0
    %392 = vmatpush1.bf16.msra.mxu0 %v353
    %393 = vmatprep.subr.bf16.mxu0 0
    %394 = vmatpush1.bf16.msra.mxu0 %v354
    %395 = vmatprep.subr.bf16.mxu0 0
    %396 = vmatpush1.bf16.msra.mxu0 %v355
    %397 = vmatprep.subr.bf16.mxu0 0
    %398 = vmatpush1.bf16.msra.mxu0 %v356
    %399 = vmatprep.subr.bf16.mxu0 0
    %400 = vmatpush1.bf16.msra.mxu0 %v357
    %401 = vmatprep.subr.bf16.mxu0 0
    %402 = vmatpush1.bf16.msra.mxu0 %v358
    %403 = vmatprep.subr.bf16.mxu0 0
    %404 = vmatpush1.bf16.msra.mxu0 %v359
    %405 = vmatprep.subr.bf16.mxu0 0
    %406 = vmatpush1.bf16.msra.mxu0 %v360
    %407 = vmatprep.subr.bf16.mxu0 0
    %408 = vmatpush1.bf16.msra.mxu0 %v361
    %409 = vmatprep.subr.bf16.mxu0 0
    %410 = vmatpush1.bf16.msra.mxu0 %v362
    %411 = vmatprep.mubr.bf16.mxu0 %v241
    %412 = vmatmul.mubr.bf16.gmra.mrb[0].mxu0 %v240
    %v413 = vpop.f32.mrb[0].mxu0
    %v414 = vadd.f32 %v281, %v413
    %v415 = vpop.f32.mrb[0].mxu0
    %v416 = vpop.f32.mrb[0].mxu0
    %v417 = vadd.f32 %v281, %v416
    %v418 = vpop.f32.mrb[0].mxu0
    %419 = vmatprep.mubr.bf16.mxu0 %v243
    %420 = vmatmul.mubr.bf16.gmra.mrb[0].mxu0 %v242
    %v421 = vpop.f32.mrb[0].mxu0
    %v422 = vadd.f32 %v281, %v421
    %v423 = vpop.f32.mrb[0].mxu0
    %v424 = vpop.f32.mrb[0].mxu0
    %v425 = vadd.f32 %v281, %v424
    %v426 = vpop.f32.mrb[0].mxu0
    %427 = vdwg.mxu0
    %v428 = vmax.f32 %v414, 0.0
    %v429 = vmax.f32 %v417, 0.0
    %v430 = vmax.f32 %v422, 0.0
    %v431 = vmax.f32 %v425, 0.0
    %v432 = vrot.slane %v428, 7
    %v433 = vrot.slane %v429, 7
    %v434 = vrot.slane %v430, 7
    %v435 = vrot.slane %v431, 7
    %v436 = vsel %vm223, %v434, %v435
    %v437 = vsel %vm223, %v433, %v434
    %v438 = vsel %vm223, %v432, %v433
    %v439 = vsel %vm223, %v435, %v432
    %v440 = vsel %vm232, %v439, 0.0
    %v441 = vsel %vm233, %v438, 0.0
    %v442 = vsel %vm234, %v437, 0.0
    %v443 = vsel %vm235, %v436, 0.0
    %v444 = vpack.c.bf16 %v441, %v440
    %v445 = vpack.c.bf16 %v429, %v428
    %v446 = vpack.c.bf16 %v443, %v442
    %v447 = vpack.c.bf16 %v431, %v430
    %v448 = vld [vmem:[#allocation6] sm:$0xf]
    %v449 = vld [vmem:[#allocation6 + $0x4] sm:$0xf]
    %v450 = vld [vmem:[#allocation6 + $0x8] sm:$0xf]
    %v451 = vld [vmem:[#allocation6 + $0xc] sm:$0xf]
    %v452 = vld [vmem:[#allocation6 + $0x10] sm:$0xf]
    %v453 = vld [vmem:[#allocation6 + $0x14] sm:$0xf]
    %v454 = vld [vmem:[#allocation6 + $0x18] sm:$0xf]
    %v455 = vld [vmem:[#allocation6 + $0x1c] sm:$0xf]
    %v456 = vld [vmem:[#allocation6 + $0x20] sm:$0xf]
    %v457 = vld [vmem:[#allocation6 + $0x24] sm:$0xf]
    %v458 = vld [vmem:[#allocation6 + $0x28] sm:$0xf]
    %v459 = vld [vmem:[#allocation6 + $0x2c] sm:$0xf]
    %v460 = vld [vmem:[#allocation6 + $0x30] sm:$0xf]
    %v461 = vld [vmem:[#allocation6 + $0x34] sm:$0xf]
    %v462 = vld [vmem:[#allocation6 + $0x38] sm:$0xf]
    %v463 = vld [vmem:[#allocation6 + $0x3c] sm:$0xf]
    %v464 = vld [vmem:[#allocation6 + $0x40] sm:$0xf]
    %v465 = vld [vmem:[#allocation6 + $0x44] sm:$0xf]
    %v466 = vld [vmem:[#allocation6 + $0x48] sm:$0xf]
    %v467 = vld [vmem:[#allocation6 + $0x4c] sm:$0xf]
    %v468 = vld [vmem:[#allocation6 + $0x50] sm:$0xf]
    %v469 = vld [vmem:[#allocation6 + $0x54] sm:$0xf]
    %v470 = vld [vmem:[#allocation6 + $0x58] sm:$0xf]
    %v471 = vld [vmem:[#allocation6 + $0x5c] sm:$0xf]
    %v472 = vld [vmem:[#allocation6 + $0x60] sm:$0xf]
    %v473 = vld [vmem:[#allocation6 + $0x64] sm:$0xf]
    %v474 = vld [vmem:[#allocation6 + $0x68] sm:$0xf]
    %v475 = vld [vmem:[#allocation6 + $0x6c] sm:$0xf]
    %v476 = vld [vmem:[#allocation6 + $0x70] sm:$0xf]
    %v477 = vld [vmem:[#allocation6 + $0x74] sm:$0xf]
    %v478 = vld [vmem:[#allocation6 + $0x78] sm:$0xf]
    %v479 = vld [vmem:[#allocation6 + $0x7c] sm:$0xf]
    %v480 = vld [vmem:[%s4] sm:$0x1]
    %v482 = vlaneseq
    %v483 = vshrl.u32 %v482, 7
    %v484 = vsub.s32 0, %v483
    %v485 = vrot.slane %v480, %v484
    %v519 = vunpack.c.l.b16 %v448
    %v520 = vunpack.c.l.b16 %v449
    %v521 = vunpack.c.l.b16 %v450
    %v522 = vunpack.c.l.b16 %v451
    %v523 = vunpack.c.l.b16 %v452
    %v524 = vunpack.c.l.b16 %v453
    %v525 = vunpack.c.l.b16 %v454
    %v526 = vunpack.c.l.b16 %v455
    %v527 = vunpack.c.l.b16 %v456
    %v528 = vunpack.c.l.b16 %v457
    %v529 = vunpack.c.l.b16 %v458
    %v530 = vunpack.c.l.b16 %v459
    %v531 = vunpack.c.l.b16 %v460
    %v532 = vunpack.c.l.b16 %v461
    %v533 = vunpack.c.l.b16 %v462
    %v534 = vunpack.c.l.b16 %v463
    %v535 = vunpack.c.l.b16 %v464
    %v536 = vunpack.c.l.b16 %v465
    %v537 = vunpack.c.l.b16 %v466
    %v538 = vunpack.c.l.b16 %v467
    %v539 = vunpack.c.l.b16 %v468
    %v540 = vunpack.c.l.b16 %v469
    %v541 = vunpack.c.l.b16 %v470
    %v542 = vunpack.c.l.b16 %v471
    %v543 = vunpack.c.l.b16 %v472
    %v544 = vunpack.c.l.b16 %v473
    %v545 = vunpack.c.l.b16 %v474
    %v546 = vunpack.c.l.b16 %v475
    %v547 = vunpack.c.l.b16 %v476
    %v548 = vunpack.c.l.b16 %v477
    %v549 = vunpack.c.l.b16 %v478
    %v550 = vunpack.c.l.b16 %v479
    %v551 = vpack.c.b16 %v520, %v519
    %v552 = vpack.c.b16 %v522, %v521
    %v553 = vpack.c.b16 %v524, %v523
    %v554 = vpack.c.b16 %v526, %v525
    %v555 = vpack.c.b16 %v528, %v527
    %v556 = vpack.c.b16 %v530, %v529
    %v557 = vpack.c.b16 %v532, %v531
    %v558 = vpack.c.b16 %v534, %v533
    %v559 = vpack.c.b16 %v536, %v535
    %v560 = vpack.c.b16 %v538, %v537
    %v561 = vpack.c.b16 %v540, %v539
    %v562 = vpack.c.b16 %v542, %v541
    %v563 = vpack.c.b16 %v544, %v543
    %v564 = vpack.c.b16 %v546, %v545
    %v565 = vpack.c.b16 %v548, %v547
    %v566 = vpack.c.b16 %v550, %v549
    %583 = vmatprep.subr.bf16.mxu0 0
    %584 = vmatpush1.bf16.msra.mxu0 %v551
    %585 = vmatprep.subr.bf16.mxu0 0
    %586 = vmatpush1.bf16.msra.mxu0 %v552
    %587 = vmatprep.subr.bf16.mxu0 0
    %588 = vmatpush1.bf16.msra.mxu0 %v553
    %589 = vmatprep.subr.bf16.mxu0 0
    %590 = vmatpush1.bf16.msra.mxu0 %v554
    %591 = vmatprep.subr.bf16.mxu0 0
    %592 = vmatpush1.bf16.msra.mxu0 %v555
    %593 = vmatprep.subr.bf16.mxu0 0
    %594 = vmatpush1.bf16.msra.mxu0 %v556
    %595 = vmatprep.subr.bf16.mxu0 0
    %596 = vmatpush1.bf16.msra.mxu0 %v557
    %597 = vmatprep.subr.bf16.mxu0 0
    %598 = vmatpush1.bf16.msra.mxu0 %v558
    %599 = vmatprep.subr.bf16.mxu0 0
    %600 = vmatpush1.bf16.msra.mxu0 %v559
    %601 = vmatprep.subr.bf16.mxu0 0
    %602 = vmatpush1.bf16.msra.mxu0 %v560
    %603 = vmatprep.subr.bf16.mxu0 0
    %604 = vmatpush1.bf16.msra.mxu0 %v561
    %605 = vmatprep.subr.bf16.mxu0 0
    %606 = vmatpush1.bf16.msra.mxu0 %v562
    %607 = vmatprep.subr.bf16.mxu0 0
    %608 = vmatpush1.bf16.msra.mxu0 %v563
    %609 = vmatprep.subr.bf16.mxu0 0
    %610 = vmatpush1.bf16.msra.mxu0 %v564
    %611 = vmatprep.subr.bf16.mxu0 0
    %612 = vmatpush1.bf16.msra.mxu0 %v565
    %613 = vmatprep.subr.bf16.mxu0 0
    %614 = vmatpush1.bf16.msra.mxu0 %v566
    %615 = vmatprep.mubr.bf16.mxu0 %v445
    %616 = vmatmul.mubr.bf16.gmra.mrb[0].mxu0 %v444
    %v617 = vpop.f32.mrb[0].mxu0
    %v618 = vadd.f32 %v485, %v617
    %v619 = vpop.f32.mrb[0].mxu0
    %v620 = vpop.f32.mrb[0].mxu0
    %v621 = vadd.f32 %v485, %v620
    %v622 = vpop.f32.mrb[0].mxu0
    %623 = vmatprep.mubr.bf16.mxu0 %v447
    %624 = vmatmul.mubr.bf16.gmra.mrb[0].mxu0 %v446
    %v625 = vpop.f32.mrb[0].mxu0
    %v626 = vadd.f32 %v485, %v625
    %v627 = vpop.f32.mrb[0].mxu0
    %v628 = vpop.f32.mrb[0].mxu0
    %v629 = vadd.f32 %v485, %v628
    %v630 = vpop.f32.mrb[0].mxu0
    %631 = vdwg.mxu0
    %v632 = vmax.f32 %v618, 0.0
    %v633 = vmax.f32 %v621, 0.0
    %v634 = vmax.f32 %v626, 0.0
    %v635 = vmax.f32 %v629, 0.0
    %v636 = vld [vmem:[#allocation7] sm:$0xf]
    %v637 = vld [vmem:[#allocation7 + $0x4] sm:$0xf]
    %v638 = vld [vmem:[#allocation7 + $0x8] sm:$0xf]
    %v639 = vld [vmem:[#allocation7 + $0xc] sm:$0xf]
    %v640 = vld [vmem:[#allocation7 + $0x10] sm:$0xf]
    %v641 = vld [vmem:[#allocation7 + $0x14] sm:$0xf]
    %v642 = vld [vmem:[#allocation7 + $0x18] sm:$0xf]
    %v643 = vld [vmem:[#allocation7 + $0x1c] sm:$0xf]
    %v644 = vld [vmem:[#allocation7 + $0x20] sm:$0xf]
    %v645 = vld [vmem:[#allocation7 + $0x24] sm:$0xf]
    %v646 = vld [vmem:[#allocation7 + $0x28] sm:$0xf]
    %v647 = vld [vmem:[#allocation7 + $0x2c] sm:$0xf]
    %v648 = vld [vmem:[#allocation7 + $0x30] sm:$0xf]
    %v649 = vld [vmem:[#allocation7 + $0x34] sm:$0xf]
    %v650 = vld [vmem:[#allocation7 + $0x38] sm:$0xf]
    %v651 = vld [vmem:[#allocation7 + $0x3c] sm:$0xf]
    %v652 = vld [vmem:[%s6] sm:$0x1]
    %v654 = vlaneseq
    %v655 = vshrl.u32 %v654, 7
    %v656 = vsub.s32 0, %v655
    %v657 = vrot.slane %v652, %v656
    %v675 = vunpack.c.l.b16 %v636
    %v676 = vunpack.c.l.b16 %v637
    %v677 = vunpack.c.l.b16 %v638
    %v678 = vunpack.c.l.b16 %v639
    %v679 = vunpack.c.l.b16 %v640
    %v680 = vunpack.c.l.b16 %v641
    %v681 = vunpack.c.l.b16 %v642
    %v682 = vunpack.c.l.b16 %v643
    %v683 = vunpack.c.l.b16 %v644
    %v684 = vunpack.c.l.b16 %v645
    %v685 = vunpack.c.l.b16 %v646
    %v686 = vunpack.c.l.b16 %v647
    %v687 = vunpack.c.l.b16 %v648
    %v688 = vunpack.c.l.b16 %v649
    %v689 = vunpack.c.l.b16 %v650
    %v690 = vunpack.c.l.b16 %v651
    %v691 = vpack.c.b16 %v676, %v675
    %v692 = vpack.c.b16 %v678, %v677
    %v693 = vpack.c.b16 %v680, %v679
    %v694 = vpack.c.b16 %v682, %v681
    %v695 = vpack.c.b16 %v684, %v683
    %v696 = vpack.c.b16 %v686, %v685
    %v697 = vpack.c.b16 %v688, %v687
    %v698 = vpack.c.b16 %v690, %v689
    %707 = vmatprep.subr.bf16.mxu0 0
    %708 = vmatpush1.bf16.msra.mxu0 %v691
    %709 = vmatprep.subr.bf16.mxu0 0
    %710 = vmatpush1.bf16.msra.mxu0 %v692
    %711 = vmatprep.subr.bf16.mxu0 0
    %712 = vmatpush1.bf16.msra.mxu0 %v693
    %713 = vmatprep.subr.bf16.mxu0 0
    %714 = vmatpush1.bf16.msra.mxu0 %v694
    %715 = vmatprep.subr.bf16.mxu0 0
    %716 = vmatpush1.bf16.msra.mxu0 %v695
    %717 = vmatprep.subr.bf16.mxu0 0
    %718 = vmatpush1.bf16.msra.mxu0 %v696
    %719 = vmatprep.subr.bf16.mxu0 0
    %720 = vmatpush1.bf16.msra.mxu0 %v697
    %721 = vmatprep.subr.bf16.mxu0 0
    %722 = vmatpush1.bf16.msra.mxu0 %v698
    %723 = vmatprep.subr.bf16.mxu0 0
    %724 = vmatpush1.bf16.msra.mxu0 0
    %725 = vmatprep.subr.bf16.mxu0 0
    %726 = vmatpush1.bf16.msra.mxu0 0
    %727 = vmatprep.subr.bf16.mxu0 0
    %728 = vmatpush1.bf16.msra.mxu0 0
    %729 = vmatprep.subr.bf16.mxu0 0
    %730 = vmatpush1.bf16.msra.mxu0 0
    %731 = vmatprep.subr.bf16.mxu0 0
    %732 = vmatpush1.bf16.msra.mxu0 0
    %733 = vmatprep.subr.bf16.mxu0 0
    %734 = vmatpush1.bf16.msra.mxu0 0
    %735 = vmatprep.subr.bf16.mxu0 0
    %736 = vmatpush1.bf16.msra.mxu0 0
    %737 = vmatprep.subr.bf16.mxu0 0
    %738 = vmatpush1.bf16.msra.mxu0 0
    %739 = vmatprep.mubr.bf16.mxu0 0
    %740 = vmatmul.mubr.bf16.gmra.mrb[0].mxu0 %v241
    %v741 = vpop.f32.mrb[0].mxu0
    %v742 = vadd.f32 %v657, %v741
    %v743 = vpop.f32.mrb[0].mxu0
    %v744 = vpop.f32.mrb[0].mxu0
    %v745 = vadd.f32 %v657, %v744
    %v746 = vpop.f32.mrb[0].mxu0
    %747 = vmatprep.mubr.bf16.mxu0 0
    %748 = vmatmul.mubr.bf16.gmra.mrb[0].mxu0 %v243
    %v749 = vpop.f32.mrb[0].mxu0
    %v750 = vadd.f32 %v657, %v749
    %v751 = vpop.f32.mrb[0].mxu0
    %v752 = vpop.f32.mrb[0].mxu0
    %v753 = vadd.f32 %v657, %v752
    %v754 = vpop.f32.mrb[0].mxu0
    %755 = vdwg.mxu0
    %v756 = vadd.f32 %v632, %v742
    %v757 = vadd.f32 %v633, %v745
    %v758 = vadd.f32 %v634, %v750
    %v759 = vadd.f32 %v635, %v753
    %v760 = vmax.f32 %v756, 0.0
    %v761 = vmax.f32 %v757, 0.0
    %v762 = vmax.f32 %v758, 0.0
    %v763 = vmax.f32 %v759, 0.0
    %v764 = vrot.slane %v760, 6
    %v765 = vrot.slane %v761, 6
    %v766 = vrot.slane %v762, 6
    %v767 = vrot.slane %v763, 6
    %vm768 = vcmp.lt.s32.totalorder %v155, 2
    %v769 = vsel %vm768, %v766, %v767
    %v770 = vsel %vm768, %v765, %v766
    %v771 = vsel %vm768, %v764, %v765
    %v772 = vsel %vm768, %v767, %v764
    %v773 = vsel %vm211, 1, 0
    %v774 = vsel %vm212, 1, 0
    %v775 = vsel %vm213, 1, 0
    %v776 = vsel %vm214, 1, 0
    %vm777 = vcmp.eq.s32.totalorder %v773, 1
    %vm778 = vcmp.eq.s32.totalorder %v774, 1
    %vm779 = vcmp.eq.s32.totalorder %v775, 1
    %vm780 = vcmp.eq.s32.totalorder %v776, 1
    %v781 = vsel %vm777, %v772, 0.0
    %v782 = vsel %vm778, %v771, 0.0
    %v783 = vsel %vm779, %v770, 0.0
    %v784 = vsel %vm780, %v769, 0.0
    %v785 = vpack.c.bf16 %v782, %v781
    %v786 = vpack.c.bf16 %v761, %v760
    %v787 = vpack.c.bf16 %v784, %v783
    %v788 = vpack.c.bf16 %v763, %v762
    %v789 = vld [vmem:[#allocation9] sm:$0xf]
    %v790 = vld [vmem:[#allocation9 + $0x4] sm:$0xf]
    %v791 = vld [vmem:[#allocation9 + $0x8] sm:$0xf]
    %v792 = vld [vmem:[#allocation9 + $0xc] sm:$0xf]
    %v793 = vld [vmem:[#allocation9 + $0x10] sm:$0xf]
    %v794 = vld [vmem:[#allocation9 + $0x14] sm:$0xf]
    %v795 = vld [vmem:[#allocation9 + $0x18] sm:$0xf]
    %v796 = vld [vmem:[#allocation9 + $0x1c] sm:$0xf]
    %v797 = vld [vmem:[#allocation9 + $0x20] sm:$0xf]
    %v798 = vld [vmem:[#allocation9 + $0x24] sm:$0xf]
    %v799 = vld [vmem:[#allocation9 + $0x28] sm:$0xf]
    %v800 = vld [vmem:[#allocation9 + $0x2c] sm:$0xf]
    %v801 = vld [vmem:[#allocation9 + $0x30] sm:$0xf]
    %v802 = vld [vmem:[#allocation9 + $0x34] sm:$0xf]
    %v803 = vld [vmem:[#allocation9 + $0x38] sm:$0xf]
    %v804 = vld [vmem:[#allocation9 + $0x3c] sm:$0xf]
    %v805 = vld [vmem:[#allocation9 + $0x40] sm:$0xf]
    %v806 = vld [vmem:[#allocation9 + $0x44] sm:$0xf]
    %v807 = vld [vmem:[#allocation9 + $0x48] sm:$0xf]
    %v808 = vld [vmem:[#allocation9 + $0x4c] sm:$0xf]
    %v809 = vld [vmem:[#allocation9 + $0x50] sm:$0xf]
    %v810 = vld [vmem:[#allocation9 + $0x54] sm:$0xf]
    %v811 = vld [vmem:[#allocation9 + $0x58] sm:$0xf]
    %v812 = vld [vmem:[#allocation9 + $0x5c] sm:$0xf]
    %v813 = vld [vmem:[#allocation9 + $0x60] sm:$0xf]
    %v814 = vld [vmem:[#allocation9 + $0x64] sm:$0xf]
    %v815 = vld [vmem:[#allocation9 + $0x68] sm:$0xf]
    %v816 = vld [vmem:[#allocation9 + $0x6c] sm:$0xf]
    %v817 = vld [vmem:[#allocation9 + $0x70] sm:$0xf]
    %v818 = vld [vmem:[#allocation9 + $0x74] sm:$0xf]
    %v819 = vld [vmem:[#allocation9 + $0x78] sm:$0xf]
    %v820 = vld [vmem:[#allocation9 + $0x7c] sm:$0xf]
    %v821 = vld [vmem:[%s8] sm:$0x1]
    %v823 = vlaneseq
    %v824 = vshrl.u32 %v823, 7
    %v825 = vsub.s32 0, %v824
    %v826 = vrot.slane %v821, %v825
    %v860 = vunpack.c.l.b16 %v789
    %v861 = vunpack.c.l.b16 %v790
    %v862 = vunpack.c.l.b16 %v791
    %v863 = vunpack.c.l.b16 %v792
    %v864 = vunpack.c.l.b16 %v793
    %v865 = vunpack.c.l.b16 %v794
    %v866 = vunpack.c.l.b16 %v795
    %v867 = vunpack.c.l.b16 %v796
    %v868 = vunpack.c.l.b16 %v797
    %v869 = vunpack.c.l.b16 %v798
    %v870 = vunpack.c.l.b16 %v799
    %v871 = vunpack.c.l.b16 %v800
    %v872 = vunpack.c.l.b16 %v801
    %v873 = vunpack.c.l.b16 %v802
    %v874 = vunpack.c.l.b16 %v803
    %v875 = vunpack.c.l.b16 %v804
    %v876 = vunpack.c.l.b16 %v805
    %v877 = vunpack.c.l.b16 %v806
    %v878 = vunpack.c.l.b16 %v807
    %v879 = vunpack.c.l.b16 %v808
    %v880 = vunpack.c.l.b16 %v809
    %v881 = vunpack.c.l.b16 %v810
    %v882 = vunpack.c.l.b16 %v811
    %v883 = vunpack.c.l.b16 %v812
    %v884 = vunpack.c.l.b16 %v813
    %v885 = vunpack.c.l.b16 %v814
    %v886 = vunpack.c.l.b16 %v815
    %v887 = vunpack.c.l.b16 %v816
    %v888 = vunpack.c.l.b16 %v817
    %v889 = vunpack.c.l.b16 %v818
    %v890 = vunpack.c.l.b16 %v819
    %v891 = vunpack.c.l.b16 %v820
    %v892 = vpack.c.b16 %v861, %v860
    %v893 = vpack.c.b16 %v863, %v862
    %v894 = vpack.c.b16 %v865, %v864
    %v895 = vpack.c.b16 %v867, %v866
    %v896 = vpack.c.b16 %v869, %v868
    %v897 = vpack.c.b16 %v871, %v870
    %v898 = vpack.c.b16 %v873, %v872
    %v899 = vpack.c.b16 %v875, %v874
    %v900 = vpack.c.b16 %v877, %v876
    %v901 = vpack.c.b16 %v879, %v878
    %v902 = vpack.c.b16 %v881, %v880
    %v903 = vpack.c.b16 %v883, %v882
    %v904 = vpack.c.b16 %v885, %v884
    %v905 = vpack.c.b16 %v887, %v886
    %v906 = vpack.c.b16 %v889, %v888
    %v907 = vpack.c.b16 %v891, %v890
    %924 = vmatprep.subr.bf16.mxu0 0
    %925 = vmatpush1.bf16.msra.mxu0 %v892
    %926 = vmatprep.subr.bf16.mxu0 0
    %927 = vmatpush1.bf16.msra.mxu0 %v893
    %928 = vmatprep.subr.bf16.mxu0 0
    %929 = vmatpush1.bf16.msra.mxu0 %v894
    %930 = vmatprep.subr.bf16.mxu0 0
    %931 = vmatpush1.bf16.msra.mxu0 %v895
    %932 = vmatprep.subr.bf16.mxu0 0
    %933 = vmatpush1.bf16.msra.mxu0 %v896
    %934 = vmatprep.subr.bf16.mxu0 0
    %935 = vmatpush1.bf16.msra.mxu0 %v897
    %936 = vmatprep.subr.bf16.mxu0 0
    %937 = vmatpush1.bf16.msra.mxu0 %v898
    %938 = vmatprep.subr.bf16.mxu0 0
    %939 = vmatpush1.bf16.msra.mxu0 %v899
    %940 = vmatprep.subr.bf16.mxu0 0
    %941 = vmatpush1.bf16.msra.mxu0 %v900
    %942 = vmatprep.subr.bf16.mxu0 0
    %943 = vmatpush1.bf16.msra.mxu0 %v901
    %944 = vmatprep.subr.bf16.mxu0 0
    %945 = vmatpush1.bf16.msra.mxu0 %v902
    %946 = vmatprep.subr.bf16.mxu0 0
    %947 = vmatpush1.bf16.msra.mxu0 %v903
    %948 = vmatprep.subr.bf16.mxu0 0
    %949 = vmatpush1.bf16.msra.mxu0 %v904
    %950 = vmatprep.subr.bf16.mxu0 0
    %951 = vmatpush1.bf16.msra.mxu0 %v905
    %952 = vmatprep.subr.bf16.mxu0 0
    %953 = vmatpush1.bf16.msra.mxu0 %v906
    %954 = vmatprep.subr.bf16.mxu0 0
    %955 = vmatpush1.bf16.msra.mxu0 %v907
    %956 = vmatprep.mubr.bf16.mxu0 %v786
    %957 = vmatmul.mubr.bf16.gmra.mrb[0].mxu0 %v785
    %v958 = vpop.f32.mrb[0].mxu0
    %v959 = vadd.f32 %v826, %v958
    %v960 = vpop.f32.mrb[0].mxu0
    %v961 = vpop.f32.mrb[0].mxu0
    %v962 = vadd.f32 %v826, %v961
    %v963 = vpop.f32.mrb[0].mxu0
    %964 = vmatprep.mubr.bf16.mxu0 %v788
    %965 = vmatmul.mubr.bf16.gmra.mrb[0].mxu0 %v787
    %v966 = vpop.f32.mrb[0].mxu0
    %v967 = vadd.f32 %v826, %v966
    %v968 = vpop.f32.mrb[0].mxu0
    %v969 = vpop.f32.mrb[0].mxu0
    %v970 = vadd.f32 %v826, %v969
    %v971 = vpop.f32.mrb[0].mxu0
    %972 = vdwg.mxu0
    %v973 = vmax.f32 %v959, 0.0
    %v974 = vmax.f32 %v962, 0.0
    %v975 = vmax.f32 %v967, 0.0
    %v976 = vmax.f32 %v970, 0.0
    %v977 = vrot.slane %v973, 6
    %v978 = vrot.slane %v974, 6
    %v979 = vrot.slane %v975, 6
    %v980 = vrot.slane %v976, 6
    %v981 = vsel %vm768, %v979, %v980
    %v982 = vsel %vm768, %v978, %v979
    %v983 = vsel %vm768, %v977, %v978
    %v984 = vsel %vm768, %v980, %v977
    %v985 = vsel %vm777, %v984, 0.0
    %v986 = vsel %vm778, %v983, 0.0
    %v987 = vsel %vm779, %v982, 0.0
    %v988 = vsel %vm780, %v981, 0.0
    %v989 = vpack.c.bf16 %v986, %v985
    %v990 = vpack.c.bf16 %v974, %v973
    %v991 = vpack.c.bf16 %v988, %v987
    %v992 = vpack.c.bf16 %v976, %v975
    %v993 = vld [vmem:[#allocation10] sm:$0xf]
    %v994 = vld [vmem:[#allocation10 + $0x4] sm:$0xf]
    %v995 = vld [vmem:[#allocation10 + $0x8] sm:$0xf]
    %v996 = vld [vmem:[#allocation10 + $0xc] sm:$0xf]
    %v997 = vld [vmem:[#allocation10 + $0x10] sm:$0xf]
    %v998 = vld [vmem:[#allocation10 + $0x14] sm:$0xf]
    %v999 = vld [vmem:[#allocation10 + $0x18] sm:$0xf]
    %v1000 = vld [vmem:[#allocation10 + $0x1c] sm:$0xf]
    %v1001 = vld [vmem:[#allocation10 + $0x20] sm:$0xf]
    %v1002 = vld [vmem:[#allocation10 + $0x24] sm:$0xf]
    %v1003 = vld [vmem:[#allocation10 + $0x28] sm:$0xf]
    %v1004 = vld [vmem:[#allocation10 + $0x2c] sm:$0xf]
    %v1005 = vld [vmem:[#allocation10 + $0x30] sm:$0xf]
    %v1006 = vld [vmem:[#allocation10 + $0x34] sm:$0xf]
    %v1007 = vld [vmem:[#allocation10 + $0x38] sm:$0xf]
    %v1008 = vld [vmem:[#allocation10 + $0x3c] sm:$0xf]
    %v1009 = vld [vmem:[#allocation10 + $0x40] sm:$0xf]
    %v1010 = vld [vmem:[#allocation10 + $0x44] sm:$0xf]
    %v1011 = vld [vmem:[#allocation10 + $0x48] sm:$0xf]
    %v1012 = vld [vmem:[#allocation10 + $0x4c] sm:$0xf]
    %v1013 = vld [vmem:[#allocation10 + $0x50] sm:$0xf]
    %v1014 = vld [vmem:[#allocation10 + $0x54] sm:$0xf]
    %v1015 = vld [vmem:[#allocation10 + $0x58] sm:$0xf]
    %v1016 = vld [vmem:[#allocation10 + $0x5c] sm:$0xf]
    %v1017 = vld [vmem:[#allocation10 + $0x60] sm:$0xf]
    %v1018 = vld [vmem:[#allocation10 + $0x64] sm:$0xf]
    %v1019 = vld [vmem:[#allocation10 + $0x68] sm:$0xf]
    %v1020 = vld [vmem:[#allocation10 + $0x6c] sm:$0xf]
    %v1021 = vld [vmem:[#allocation10 + $0x70] sm:$0xf]
    %v1022 = vld [vmem:[#allocation10 + $0x74] sm:$0xf]
    %v1023 = vld [vmem:[#allocation10 + $0x78] sm:$0xf]
    %v1024 = vld [vmem:[#allocation10 + $0x7c] sm:$0xf]
    %v1025 = vld [vmem:[%s10] sm:$0x1]
    %v1027 = vlaneseq
    %v1028 = vshrl.u32 %v1027, 7
    %v1029 = vsub.s32 0, %v1028
    %v1030 = vrot.slane %v1025, %v1029
    %v1064 = vunpack.c.l.b16 %v993
    %v1065 = vunpack.c.l.b16 %v994
    %v1066 = vunpack.c.l.b16 %v995
    %v1067 = vunpack.c.l.b16 %v996
    %v1068 = vunpack.c.l.b16 %v997
    %v1069 = vunpack.c.l.b16 %v998
    %v1070 = vunpack.c.l.b16 %v999
    %v1071 = vunpack.c.l.b16 %v1000
    %v1072 = vunpack.c.l.b16 %v1001
    %v1073 = vunpack.c.l.b16 %v1002
    %v1074 = vunpack.c.l.b16 %v1003
    %v1075 = vunpack.c.l.b16 %v1004
    %v1076 = vunpack.c.l.b16 %v1005
    %v1077 = vunpack.c.l.b16 %v1006
    %v1078 = vunpack.c.l.b16 %v1007
    %v1079 = vunpack.c.l.b16 %v1008
    %v1080 = vunpack.c.l.b16 %v1009
    %v1081 = vunpack.c.l.b16 %v1010
    %v1082 = vunpack.c.l.b16 %v1011
    %v1083 = vunpack.c.l.b16 %v1012
    %v1084 = vunpack.c.l.b16 %v1013
    %v1085 = vunpack.c.l.b16 %v1014
    %v1086 = vunpack.c.l.b16 %v1015
    %v1087 = vunpack.c.l.b16 %v1016
    %v1088 = vunpack.c.l.b16 %v1017
    %v1089 = vunpack.c.l.b16 %v1018
    %v1090 = vunpack.c.l.b16 %v1019
    %v1091 = vunpack.c.l.b16 %v1020
    %v1092 = vunpack.c.l.b16 %v1021
    %v1093 = vunpack.c.l.b16 %v1022
    %v1094 = vunpack.c.l.b16 %v1023
    %v1095 = vunpack.c.l.b16 %v1024
    %v1096 = vpack.c.b16 %v1065, %v1064
    %v1097 = vpack.c.b16 %v1067, %v1066
    %v1098 = vpack.c.b16 %v1069, %v1068
    %v1099 = vpack.c.b16 %v1071, %v1070
    %v1100 = vpack.c.b16 %v1073, %v1072
    %v1101 = vpack.c.b16 %v1075, %v1074
    %v1102 = vpack.c.b16 %v1077, %v1076
    %v1103 = vpack.c.b16 %v1079, %v1078
    %v1104 = vpack.c.b16 %v1081, %v1080
    %v1105 = vpack.c.b16 %v1083, %v1082
    %v1106 = vpack.c.b16 %v1085, %v1084
    %v1107 = vpack.c.b16 %v1087, %v1086
    %v1108 = vpack.c.b16 %v1089, %v1088
    %v1109 = vpack.c.b16 %v1091, %v1090
    %v1110 = vpack.c.b16 %v1093, %v1092
    %v1111 = vpack.c.b16 %v1095, %v1094
    %1128 = vmatprep.subr.bf16.mxu0 0
    %1129 = vmatpush1.bf16.msra.mxu0 %v1096
    %1130 = vmatprep.subr.bf16.mxu0 0
    %1131 = vmatpush1.bf16.msra.mxu0 %v1097
    %1132 = vmatprep.subr.bf16.mxu0 0
    %1133 = vmatpush1.bf16.msra.mxu0 %v1098
    %1134 = vmatprep.subr.bf16.mxu0 0
    %1135 = vmatpush1.bf16.msra.mxu0 %v1099
    %1136 = vmatprep.subr.bf16.mxu0 0
    %1137 = vmatpush1.bf16.msra.mxu0 %v1100
    %1138 = vmatprep.subr.bf16.mxu0 0
    %1139 = vmatpush1.bf16.msra.mxu0 %v1101
    %1140 = vmatprep.subr.bf16.mxu0 0
    %1141 = vmatpush1.bf16.msra.mxu0 %v1102
    %1142 = vmatprep.subr.bf16.mxu0 0
    %1143 = vmatpush1.bf16.msra.mxu0 %v1103
    %1144 = vmatprep.subr.bf16.mxu0 0
    %1145 = vmatpush1.bf16.msra.mxu0 %v1104
    %1146 = vmatprep.subr.bf16.mxu0 0
    %1147 = vmatpush1.bf16.msra.mxu0 %v1105
    %1148 = vmatprep.subr.bf16.mxu0 0
    %1149 = vmatpush1.bf16.msra.mxu0 %v1106
    %1150 = vmatprep.subr.bf16.mxu0 0
    %1151 = vmatpush1.bf16.msra.mxu0 %v1107
    %1152 = vmatprep.subr.bf16.mxu0 0
    %1153 = vmatpush1.bf16.msra.mxu0 %v1108
    %1154 = vmatprep.subr.bf16.mxu0 0
    %1155 = vmatpush1.bf16.msra.mxu0 %v1109
    %1156 = vmatprep.subr.bf16.mxu0 0
    %1157 = vmatpush1.bf16.msra.mxu0 %v1110
    %1158 = vmatprep.subr.bf16.mxu0 0
    %1159 = vmatpush1.bf16.msra.mxu0 %v1111
    %1160 = vmatprep.mubr.bf16.mxu0 %v990
    %1161 = vmatmul.mubr.bf16.gmra.mrb[0].mxu0 %v989
    %v1162 = vpop.f32.mrb[0].mxu0
    %v1163 = vadd.f32 %v1030, %v1162
    %v1164 = vpop.f32.mrb[0].mxu0
    %v1165 = vpop.f32.mrb[0].mxu0
    %v1166 = vadd.f32 %v1030, %v1165
    %v1167 = vpop.f32.mrb[0].mxu0
    %1168 = vmatprep.mubr.bf16.mxu0 %v992
    %1169 = vmatmul.mubr.bf16.gmra.mrb[0].mxu0 %v991
    %v1170 = vpop.f32.mrb[0].mxu0
    %v1171 = vadd.f32 %v1030, %v1170
    %v1172 = vpop.f32.mrb[0].mxu0
    %v1173 = vpop.f32.mrb[0].mxu0
    %v1174 = vadd.f32 %v1030, %v1173
    %v1175 = vpop.f32.mrb[0].mxu0
    %1176 = vdwg.mxu0
    %v1177 = vmax.f32 %v1163, 0.0
    %v1178 = vmax.f32 %v1166, 0.0
    %v1179 = vmax.f32 %v1171, 0.0
    %v1180 = vmax.f32 %v1174, 0.0
    %v1181 = vadd.f32 %v1177, %v760
    %v1182 = vadd.f32 %v1178, %v761
    %v1183 = vadd.f32 %v1179, %v762
    %v1184 = vadd.f32 %v1180, %v763
    %v1185 = vmax.f32 %v1181, 0.0
    %v1186 = vmax.f32 %v1182, 0.0
    %v1187 = vmax.f32 %v1183, 0.0
    %v1188 = vmax.f32 %v1184, 0.0
    %v1189 = vrot.slane %v1185, 4
    %v1190 = vrot.slane %v1186, 4
    %v1191 = vrot.slane %v1187, 4
    %v1192 = vrot.slane %v1188, 4
    %vm1193 = vcmp.lt.s32.totalorder %v155, 4
    %v1194 = vsel %vm1193, %v1191, %v1192
    %v1195 = vsel %vm1193, %v1190, %v1191
    %v1196 = vsel %vm1193, %v1189, %v1190
    %v1197 = vsel %vm1193, %v1192, %v1189
    %v1198 = vsel %vm215, 1, 0
    %v1199 = vsel %vm216, 1, 0
    %v1200 = vsel %vm217, 1, 0
    %v1201 = vsel %vm218, 1, 0
    %vm1202 = vcmp.eq.s32.totalorder %v1198, 1
    %vm1203 = vcmp.eq.s32.totalorder %v1199, 1
    %vm1204 = vcmp.eq.s32.totalorder %v1200, 1
    %vm1205 = vcmp.eq.s32.totalorder %v1201, 1
    %v1206 = vsel %vm1202, %v1197, 0.0
    %v1207 = vsel %vm1203, %v1196, 0.0
    %v1208 = vsel %vm1204, %v1195, 0.0
    %v1209 = vsel %vm1205, %v1194, 0.0
    %v1210 = vpack.c.bf16 %v1207, %v1206
    %v1211 = vpack.c.bf16 %v1186, %v1185
    %v1212 = vpack.c.bf16 %v1209, %v1208
    %v1213 = vpack.c.bf16 %v1188, %v1187
    %v1214 = vld [vmem:[#allocation12] sm:$0xf]
    %v1215 = vld [vmem:[#allocation12 + $0x4] sm:$0xf]
    %v1216 = vld [vmem:[#allocation12 + $0x8] sm:$0xf]
    %v1217 = vld [vmem:[#allocation12 + $0xc] sm:$0xf]
    %v1218 = vld [vmem:[#allocation12 + $0x10] sm:$0xf]
    %v1219 = vld [vmem:[#allocation12 + $0x14] sm:$0xf]
    %v1220 = vld [vmem:[#allocation12 + $0x18] sm:$0xf]
    %v1221 = vld [vmem:[#allocation12 + $0x1c] sm:$0xf]
    %v1222 = vld [vmem:[#allocation12 + $0x20] sm:$0xf]
    %v1223 = vld [vmem:[#allocation12 + $0x24] sm:$0xf]
    %v1224 = vld [vmem:[#allocation12 + $0x28] sm:$0xf]
    %v1225 = vld [vmem:[#allocation12 + $0x2c] sm:$0xf]
    %v1226 = vld [vmem:[#allocation12 + $0x30] sm:$0xf]
    %v1227 = vld [vmem:[#allocation12 + $0x34] sm:$0xf]
    %v1228 = vld [vmem:[#allocation12 + $0x38] sm:$0xf]
    %v1229 = vld [vmem:[#allocation12 + $0x3c] sm:$0xf]
    %v1230 = vld [vmem:[#allocation12 + $0x40] sm:$0xf]
    %v1231 = vld [vmem:[#allocation12 + $0x44] sm:$0xf]
    %v1232 = vld [vmem:[#allocation12 + $0x48] sm:$0xf]
    %v1233 = vld [vmem:[#allocation12 + $0x4c] sm:$0xf]
    %v1234 = vld [vmem:[#allocation12 + $0x50] sm:$0xf]
    %v1235 = vld [vmem:[#allocation12 + $0x54] sm:$0xf]
    %v1236 = vld [vmem:[#allocation12 + $0x58] sm:$0xf]
    %v1237 = vld [vmem:[#allocation12 + $0x5c] sm:$0xf]
    %v1238 = vld [vmem:[#allocation12 + $0x60] sm:$0xf]
    %v1239 = vld [vmem:[#allocation12 + $0x64] sm:$0xf]
    %v1240 = vld [vmem:[#allocation12 + $0x68] sm:$0xf]
    %v1241 = vld [vmem:[#allocation12 + $0x6c] sm:$0xf]
    %v1242 = vld [vmem:[#allocation12 + $0x70] sm:$0xf]
    %v1243 = vld [vmem:[#allocation12 + $0x74] sm:$0xf]
    %v1244 = vld [vmem:[#allocation12 + $0x78] sm:$0xf]
    %v1245 = vld [vmem:[#allocation12 + $0x7c] sm:$0xf]
    %v1246 = vld [vmem:[%s12] sm:$0x1]
    %v1248 = vlaneseq
    %v1249 = vshrl.u32 %v1248, 7
    %v1250 = vsub.s32 0, %v1249
    %v1251 = vrot.slane %v1246, %v1250
    %v1285 = vunpack.c.l.b16 %v1214
    %v1286 = vunpack.c.l.b16 %v1215
    %v1287 = vunpack.c.l.b16 %v1216
    %v1288 = vunpack.c.l.b16 %v1217
    %v1289 = vunpack.c.l.b16 %v1218
    %v1290 = vunpack.c.l.b16 %v1219
    %v1291 = vunpack.c.l.b16 %v1220
    %v1292 = vunpack.c.l.b16 %v1221
    %v1293 = vunpack.c.l.b16 %v1222
    %v1294 = vunpack.c.l.b16 %v1223
    %v1295 = vunpack.c.l.b16 %v1224
    %v1296 = vunpack.c.l.b16 %v1225
    %v1297 = vunpack.c.l.b16 %v1226
    %v1298 = vunpack.c.l.b16 %v1227
    %v1299 = vunpack.c.l.b16 %v1228
    %v1300 = vunpack.c.l.b16 %v1229
    %v1301 = vunpack.c.l.b16 %v1230
    %v1302 = vunpack.c.l.b16 %v1231
    %v1303 = vunpack.c.l.b16 %v1232
    %v1304 = vunpack.c.l.b16 %v1233
    %v1305 = vunpack.c.l.b16 %v1234
    %v1306 = vunpack.c.l.b16 %v1235
    %v1307 = vunpack.c.l.b16 %v1236
    %v1308 = vunpack.c.l.b16 %v1237
    %v1309 = vunpack.c.l.b16 %v1238
    %v1310 = vunpack.c.l.b16 %v1239
    %v1311 = vunpack.c.l.b16 %v1240
    %v1312 = vunpack.c.l.b16 %v1241
    %v1313 = vunpack.c.l.b16 %v1242
    %v1314 = vunpack.c.l.b16 %v1243
    %v1315 = vunpack.c.l.b16 %v1244
    %v1316 = vunpack.c.l.b16 %v1245
    %v1317 = vpack.c.b16 %v1286, %v1285
    %v1318 = vpack.c.b16 %v1288, %v1287
    %v1319 = vpack.c.b16 %v1290, %v1289
    %v1320 = vpack.c.b16 %v1292, %v1291
    %v1321 = vpack.c.b16 %v1294, %v1293
    %v1322 = vpack.c.b16 %v1296, %v1295
    %v1323 = vpack.c.b16 %v1298, %v1297
    %v1324 = vpack.c.b16 %v1300, %v1299
    %v1325 = vpack.c.b16 %v1302, %v1301
    %v1326 = vpack.c.b16 %v1304, %v1303
    %v1327 = vpack.c.b16 %v1306, %v1305
    %v1328 = vpack.c.b16 %v1308, %v1307
    %v1329 = vpack.c.b16 %v1310, %v1309
    %v1330 = vpack.c.b16 %v1312, %v1311
    %v1331 = vpack.c.b16 %v1314, %v1313
    %v1332 = vpack.c.b16 %v1316, %v1315
    %1349 = vmatprep.subr.bf16.mxu0 0
    %1350 = vmatpush1.bf16.msra.mxu0 %v1317
    %1351 = vmatprep.subr.bf16.mxu0 0
    %1352 = vmatpush1.bf16.msra.mxu0 %v1318
    %1353 = vmatprep.subr.bf16.mxu0 0
    %1354 = vmatpush1.bf16.msra.mxu0 %v1319
    %1355 = vmatprep.subr.bf16.mxu0 0
    %1356 = vmatpush1.bf16.msra.mxu0 %v1320
    %1357 = vmatprep.subr.bf16.mxu0 0
    %1358 = vmatpush1.bf16.msra.mxu0 %v1321
    %1359 = vmatprep.subr.bf16.mxu0 0
    %1360 = vmatpush1.bf16.msra.mxu0 %v1322
    %1361 = vmatprep.subr.bf16.mxu0 0
    %1362 = vmatpush1.bf16.msra.mxu0 %v1323
    %1363 = vmatprep.subr.bf16.mxu0 0
    %1364 = vmatpush1.bf16.msra.mxu0 %v1324
    %1365 = vmatprep.subr.bf16.mxu0 0
    %1366 = vmatpush1.bf16.msra.mxu0 %v1325
    %1367 = vmatprep.subr.bf16.mxu0 0
    %1368 = vmatpush1.bf16.msra.mxu0 %v1326
    %1369 = vmatprep.subr.bf16.mxu0 0
    %1370 = vmatpush1.bf16.msra.mxu0 %v1327
    %1371 = vmatprep.subr.bf16.mxu0 0
    %1372 = vmatpush1.bf16.msra.mxu0 %v1328
    %1373 = vmatprep.subr.bf16.mxu0 0
    %1374 = vmatpush1.bf16.msra.mxu0 %v1329
    %1375 = vmatprep.subr.bf16.mxu0 0
    %1376 = vmatpush1.bf16.msra.mxu0 %v1330
    %1377 = vmatprep.subr.bf16.mxu0 0
    %1378 = vmatpush1.bf16.msra.mxu0 %v1331
    %1379 = vmatprep.subr.bf16.mxu0 0
    %1380 = vmatpush1.bf16.msra.mxu0 %v1332
    %1381 = vmatprep.mubr.bf16.mxu0 %v1211
    %1382 = vmatmul.mubr.bf16.gmra.mrb[0].mxu0 %v1210
    %v1383 = vpop.f32.mrb[0].mxu0
    %v1384 = vadd.f32 %v1251, %v1383
    %v1385 = vpop.f32.mrb[0].mxu0
    %v1386 = vpop.f32.mrb[0].mxu0
    %v1387 = vadd.f32 %v1251, %v1386
    %v1388 = vpop.f32.mrb[0].mxu0
    %1389 = vmatprep.mubr.bf16.mxu0 %v1213
    %1390 = vmatmul.mubr.bf16.gmra.mrb[0].mxu0 %v1212
    %v1391 = vpop.f32.mrb[0].mxu0
    %v1392 = vadd.f32 %v1251, %v1391
    %v1393 = vpop.f32.mrb[0].mxu0
    %v1394 = vpop.f32.mrb[0].mxu0
    %v1395 = vadd.f32 %v1251, %v1394
    %v1396 = vpop.f32.mrb[0].mxu0
    %1397 = vdwg.mxu0
    %v1398 = vmax.f32 %v1384, 0.0
    %v1399 = vmax.f32 %v1387, 0.0
    %v1400 = vmax.f32 %v1392, 0.0
    %v1401 = vmax.f32 %v1395, 0.0
    %v1402 = vrot.slane %v1398, 4
    %v1403 = vrot.slane %v1399, 4
    %v1404 = vrot.slane %v1400, 4
    %v1405 = vrot.slane %v1401, 4
    %v1406 = vsel %vm1193, %v1404, %v1405
    %v1407 = vsel %vm1193, %v1403, %v1404
    %v1408 = vsel %vm1193, %v1402, %v1403
    %v1409 = vsel %vm1193, %v1405, %v1402
    %v1410 = vsel %vm1202, %v1409, 0.0
    %v1411 = vsel %vm1203, %v1408, 0.0
    %v1412 = vsel %vm1204, %v1407, 0.0
    %v1413 = vsel %vm1205, %v1406, 0.0
    %v1414 = vpack.c.bf16 %v1411, %v1410
    %v1415 = vpack.c.bf16 %v1399, %v1398
    %v1416 = vpack.c.bf16 %v1413, %v1412
    %v1417 = vpack.c.bf16 %v1401, %v1400
    %v1418 = vld [vmem:[%s13] sm:$0xf]
    %v1419 = vld [vmem:[%s13 + $0x4] sm:$0xf]
    %v1420 = vld [vmem:[%s13 + $0x8] sm:$0xf]
    %v1421 = vld [vmem:[%s13 + $0xc] sm:$0xf]
    %v1422 = vld [vmem:[%s13 + $0x10] sm:$0xf]
    %v1423 = vld [vmem:[%s13 + $0x14] sm:$0xf]
    %v1424 = vld [vmem:[%s13 + $0x18] sm:$0xf]
    %v1425 = vld [vmem:[%s13 + $0x1c] sm:$0xf]
    %v1426 = vld [vmem:[%s13 + $0x20] sm:$0xf]
    %v1427 = vld [vmem:[%s13 + $0x24] sm:$0xf]
    %v1428 = vld [vmem:[%s13 + $0x28] sm:$0xf]
    %v1429 = vld [vmem:[%s13 + $0x2c] sm:$0xf]
    %v1430 = vld [vmem:[%s13 + $0x30] sm:$0xf]
    %v1431 = vld [vmem:[%s13 + $0x34] sm:$0xf]
    %v1432 = vld [vmem:[%s13 + $0x38] sm:$0xf]
    %v1433 = vld [vmem:[%s13 + $0x3c] sm:$0xf]
    %v1434 = vld [vmem:[%s13 + $0x40] sm:$0xf]
    %v1435 = vld [vmem:[%s13 + $0x44] sm:$0xf]
    %v1436 = vld [vmem:[%s13 + $0x48] sm:$0xf]
    %v1437 = vld [vmem:[%s13 + $0x4c] sm:$0xf]
    %v1438 = vld [vmem:[%s13 + $0x50] sm:$0xf]
    %v1439 = vld [vmem:[%s13 + $0x54] sm:$0xf]
    %v1440 = vld [vmem:[%s13 + $0x58] sm:$0xf]
    %v1441 = vld [vmem:[%s13 + $0x5c] sm:$0xf]
    %v1442 = vld [vmem:[%s13 + $0x60] sm:$0xf]
    %v1443 = vld [vmem:[%s13 + $0x64] sm:$0xf]
    %v1444 = vld [vmem:[%s13 + $0x68] sm:$0xf]
    %v1445 = vld [vmem:[%s13 + $0x6c] sm:$0xf]
    %v1446 = vld [vmem:[%s13 + $0x70] sm:$0xf]
    %v1447 = vld [vmem:[%s13 + $0x74] sm:$0xf]
    %v1448 = vld [vmem:[%s13 + $0x78] sm:$0xf]
    %v1449 = vld [vmem:[%s13 + $0x7c] sm:$0xf]
    %v1450 = vld [vmem:[%s14] sm:$0x1]
    %v1452 = vlaneseq
    %v1453 = vshrl.u32 %v1452, 7
    %v1454 = vsub.s32 0, %v1453
    %v1455 = vrot.slane %v1450, %v1454
    %v1489 = vunpack.c.l.b16 %v1418
    %v1490 = vunpack.c.l.b16 %v1419
    %v1491 = vunpack.c.l.b16 %v1420
    %v1492 = vunpack.c.l.b16 %v1421
    %v1493 = vunpack.c.l.b16 %v1422
    %v1494 = vunpack.c.l.b16 %v1423
    %v1495 = vunpack.c.l.b16 %v1424
    %v1496 = vunpack.c.l.b16 %v1425
    %v1497 = vunpack.c.l.b16 %v1426
    %v1498 = vunpack.c.l.b16 %v1427
    %v1499 = vunpack.c.l.b16 %v1428
    %v1500 = vunpack.c.l.b16 %v1429
    %v1501 = vunpack.c.l.b16 %v1430
    %v1502 = vunpack.c.l.b16 %v1431
    %v1503 = vunpack.c.l.b16 %v1432
    %v1504 = vunpack.c.l.b16 %v1433
    %v1505 = vunpack.c.l.b16 %v1434
    %v1506 = vunpack.c.l.b16 %v1435
    %v1507 = vunpack.c.l.b16 %v1436
    %v1508 = vunpack.c.l.b16 %v1437
    %v1509 = vunpack.c.l.b16 %v1438
    %v1510 = vunpack.c.l.b16 %v1439
    %v1511 = vunpack.c.l.b16 %v1440
    %v1512 = vunpack.c.l.b16 %v1441
    %v1513 = vunpack.c.l.b16 %v1442
    %v1514 = vunpack.c.l.b16 %v1443
    %v1515 = vunpack.c.l.b16 %v1444
    %v1516 = vunpack.c.l.b16 %v1445
    %v1517 = vunpack.c.l.b16 %v1446
    %v1518 = vunpack.c.l.b16 %v1447
    %v1519 = vunpack.c.l.b16 %v1448
    %v1520 = vunpack.c.l.b16 %v1449
    %v1521 = vpack.c.b16 %v1490, %v1489
    %v1522 = vpack.c.b16 %v1492, %v1491
    %v1523 = vpack.c.b16 %v1494, %v1493
    %v1524 = vpack.c.b16 %v1496, %v1495
    %v1525 = vpack.c.b16 %v1498, %v1497
    %v1526 = vpack.c.b16 %v1500, %v1499
    %v1527 = vpack.c.b16 %v1502, %v1501
    %v1528 = vpack.c.b16 %v1504, %v1503
    %v1529 = vpack.c.b16 %v1506, %v1505
    %v1530 = vpack.c.b16 %v1508, %v1507
    %v1531 = vpack.c.b16 %v1510, %v1509
    %v1532 = vpack.c.b16 %v1512, %v1511
    %v1533 = vpack.c.b16 %v1514, %v1513
    %v1534 = vpack.c.b16 %v1516, %v1515
    %v1535 = vpack.c.b16 %v1518, %v1517
    %v1536 = vpack.c.b16 %v1520, %v1519
    %1553 = vmatprep.subr.bf16.mxu0 0
    %1554 = vmatpush1.bf16.msra.mxu0 %v1521
    %1555 = vmatprep.subr.bf16.mxu0 0
    %1556 = vmatpush1.bf16.msra.mxu0 %v1522
    %1557 = vmatprep.subr.bf16.mxu0 0
    %1558 = vmatpush1.bf16.msra.mxu0 %v1523
    %1559 = vmatprep.subr.bf16.mxu0 0
    %1560 = vmatpush1.bf16.msra.mxu0 %v1524
    %1561 = vmatprep.subr.bf16.mxu0 0
    %1562 = vmatpush1.bf16.msra.mxu0 %v1525
    %1563 = vmatprep.subr.bf16.mxu0 0
    %1564 = vmatpush1.bf16.msra.mxu0 %v1526
    %1565 = vmatprep.subr.bf16.mxu0 0
    %1566 = vmatpush1.bf16.msra.mxu0 %v1527
    %1567 = vmatprep.subr.bf16.mxu0 0
    %1568 = vmatpush1.bf16.msra.mxu0 %v1528
    %1569 = vmatprep.subr.bf16.mxu0 0
    %1570 = vmatpush1.bf16.msra.mxu0 %v1529
    %1571 = vmatprep.subr.bf16.mxu0 0
    %1572 = vmatpush1.bf16.msra.mxu0 %v1530
    %1573 = vmatprep.subr.bf16.mxu0 0
    %1574 = vmatpush1.bf16.msra.mxu0 %v1531
    %1575 = vmatprep.subr.bf16.mxu0 0
    %1576 = vmatpush1.bf16.msra.mxu0 %v1532
    %1577 = vmatprep.subr.bf16.mxu0 0
    %1578 = vmatpush1.bf16.msra.mxu0 %v1533
    %1579 = vmatprep.subr.bf16.mxu0 0
    %1580 = vmatpush1.bf16.msra.mxu0 %v1534
    %1581 = vmatprep.subr.bf16.mxu0 0
    %1582 = vmatpush1.bf16.msra.mxu0 %v1535
    %1583 = vmatprep.subr.bf16.mxu0 0
    %1584 = vmatpush1.bf16.msra.mxu0 %v1536
    %1585 = vmatprep.mubr.bf16.mxu0 %v1415
    %1586 = vmatmul.mubr.bf16.gmra.mrb[0].mxu0 %v1414
    %v1587 = vpop.f32.mrb[0].mxu0
    %v1588 = vadd.f32 %v1455, %v1587
    %v1589 = vpop.f32.mrb[0].mxu0
    %v1590 = vpop.f32.mrb[0].mxu0
    %v1591 = vadd.f32 %v1455, %v1590
    %v1592 = vpop.f32.mrb[0].mxu0
    %1593 = vmatprep.mubr.bf16.mxu0 %v1417
    %1594 = vmatmul.mubr.bf16.gmra.mrb[0].mxu0 %v1416
    %v1595 = vpop.f32.mrb[0].mxu0
    %v1596 = vadd.f32 %v1455, %v1595
    %v1597 = vpop.f32.mrb[0].mxu0
    %v1598 = vpop.f32.mrb[0].mxu0
    %v1599 = vadd.f32 %v1455, %v1598
    %v1600 = vpop.f32.mrb[0].mxu0
    %1601 = vdwg.mxu0
    %v1602 = vmax.f32 %v1588, 0.0
    %v1603 = vmax.f32 %v1591, 0.0
    %v1604 = vmax.f32 %v1596, 0.0
    %v1605 = vmax.f32 %v1599, 0.0
    %v1606 = vld [vmem:[%s15] sm:$0xf]
    %v1607 = vld [vmem:[%s15 + $0x4] sm:$0xf]
    %v1608 = vld [vmem:[%s15 + $0x8] sm:$0xf]
    %v1609 = vld [vmem:[%s15 + $0xc] sm:$0xf]
    %v1610 = vld [vmem:[%s15 + $0x10] sm:$0xf]
    %v1611 = vld [vmem:[%s15 + $0x14] sm:$0xf]
    %v1612 = vld [vmem:[%s15 + $0x18] sm:$0xf]
    %v1613 = vld [vmem:[%s15 + $0x1c] sm:$0xf]
    %v1614 = vld [vmem:[%s15 + $0x20] sm:$0xf]
    %v1615 = vld [vmem:[%s15 + $0x24] sm:$0xf]
    %v1616 = vld [vmem:[%s15 + $0x28] sm:$0xf]
    %v1617 = vld [vmem:[%s15 + $0x2c] sm:$0xf]
    %v1618 = vld [vmem:[%s15 + $0x30] sm:$0xf]
    %v1619 = vld [vmem:[%s15 + $0x34] sm:$0xf]
    %v1620 = vld [vmem:[%s15 + $0x38] sm:$0xf]
    %v1621 = vld [vmem:[%s15 + $0x3c] sm:$0xf]
    %v1622 = vld [vmem:[%s16] sm:$0x1]
    %v1624 = vlaneseq
    %v1625 = vshrl.u32 %v1624, 7
    %v1626 = vsub.s32 0, %v1625
    %v1627 = vrot.slane %v1622, %v1626
    %v1645 = vunpack.c.l.b16 %v1606
    %v1646 = vunpack.c.l.b16 %v1607
    %v1647 = vunpack.c.l.b16 %v1608
    %v1648 = vunpack.c.l.b16 %v1609
    %v1649 = vunpack.c.l.b16 %v1610
    %v1650 = vunpack.c.l.b16 %v1611
    %v1651 = vunpack.c.l.b16 %v1612
    %v1652 = vunpack.c.l.b16 %v1613
    %v1653 = vunpack.c.l.b16 %v1614
    %v1654 = vunpack.c.l.b16 %v1615
    %v1655 = vunpack.c.l.b16 %v1616
    %v1656 = vunpack.c.l.b16 %v1617
    %v1657 = vunpack.c.l.b16 %v1618
    %v1658 = vunpack.c.l.b16 %v1619
    %v1659 = vunpack.c.l.b16 %v1620
    %v1660 = vunpack.c.l.b16 %v1621
    %v1661 = vpack.c.b16 %v1646, %v1645
    %v1662 = vpack.c.b16 %v1648, %v1647
    %v1663 = vpack.c.b16 %v1650, %v1649
    %v1664 = vpack.c.b16 %v1652, %v1651
    %v1665 = vpack.c.b16 %v1654, %v1653
    %v1666 = vpack.c.b16 %v1656, %v1655
    %v1667 = vpack.c.b16 %v1658, %v1657
    %v1668 = vpack.c.b16 %v1660, %v1659
    %1677 = vmatprep.subr.bf16.mxu0 0
    %1678 = vmatpush1.bf16.msra.mxu0 %v1661
    %1679 = vmatprep.subr.bf16.mxu0 0
    %1680 = vmatpush1.bf16.msra.mxu0 %v1662
    %1681 = vmatprep.subr.bf16.mxu0 0
    %1682 = vmatpush1.bf16.msra.mxu0 %v1663
    %1683 = vmatprep.subr.bf16.mxu0 0
    %1684 = vmatpush1.bf16.msra.mxu0 %v1664
    %1685 = vmatprep.subr.bf16.mxu0 0
    %1686 = vmatpush1.bf16.msra.mxu0 %v1665
    %1687 = vmatprep.subr.bf16.mxu0 0
    %1688 = vmatpush1.bf16.msra.mxu0 %v1666
    %1689 = vmatprep.subr.bf16.mxu0 0
    %1690 = vmatpush1.bf16.msra.mxu0 %v1667
    %1691 = vmatprep.subr.bf16.mxu0 0
    %1692 = vmatpush1.bf16.msra.mxu0 %v1668
    %1693 = vmatprep.subr.bf16.mxu0 0
    %1694 = vmatpush1.bf16.msra.mxu0 0
    %1695 = vmatprep.subr.bf16.mxu0 0
    %1696 = vmatpush1.bf16.msra.mxu0 0
    %1697 = vmatprep.subr.bf16.mxu0 0
    %1698 = vmatpush1.bf16.msra.mxu0 0
    %1699 = vmatprep.subr.bf16.mxu0 0
    %1700 = vmatpush1.bf16.msra.mxu0 0
    %1701 = vmatprep.subr.bf16.mxu0 0
    %1702 = vmatpush1.bf16.msra.mxu0 0
    %1703 = vmatprep.subr.bf16.mxu0 0
    %1704 = vmatpush1.bf16.msra.mxu0 0
    %1705 = vmatprep.subr.bf16.mxu0 0
    %1706 = vmatpush1.bf16.msra.mxu0 0
    %1707 = vmatprep.subr.bf16.mxu0 0
    %1708 = vmatpush1.bf16.msra.mxu0 0
    %1709 = vmatprep.mubr.bf16.mxu0 0
    %1710 = vmatmul.mubr.bf16.gmra.mrb[0].mxu0 %v1211
    %v1711 = vpop.f32.mrb[0].mxu0
    %v1712 = vadd.f32 %v1627, %v1711
    %v1713 = vpop.f32.mrb[0].mxu0
    %v1714 = vpop.f32.mrb[0].mxu0
    %v1715 = vadd.f32 %v1627, %v1714
    %v1716 = vpop.f32.mrb[0].mxu0
    %1717 = vmatprep.mubr.bf16.mxu0 0
    %1718 = vmatmul.mubr.bf16.gmra.mrb[0].mxu0 %v1213
    %v1719 = vpop.f32.mrb[0].mxu0
    %v1720 = vadd.f32 %v1627, %v1719
    %v1721 = vpop.f32.mrb[0].mxu0
    %v1722 = vpop.f32.mrb[0].mxu0
    %v1723 = vadd.f32 %v1627, %v1722
    %v1724 = vpop.f32.mrb[0].mxu0
    %1725 = vdwg.mxu0
    %v1726 = vadd.f32 %v1602, %v1712
    %v1727 = vadd.f32 %v1603, %v1715
    %v1728 = vadd.f32 %v1604, %v1720
    %v1729 = vadd.f32 %v1605, %v1723
    %v1730 = vmax.f32 %v1726, 0.0
    %v1731 = vmax.f32 %v1727, 0.0
    %v1732 = vmax.f32 %v1728, 0.0
    %v1733 = vmax.f32 %v1729, 0.0
    %1734 = vst [vmem:[%s17] sm:$0xff] %v1730
    %1735 = vst [vmem:[%s17 + $0x8] sm:$0xff] %v1731
    %1736 = vst [vmem:[%s17 + $0x10] sm:$0xff] %v1732
    %1737 = vst [vmem:[%s17 + $0x18] sm:$0xff] %v1733
    // Predicated region
    $region98: #{_lambda_.1} parent=1 // pred_check
      _
    $region99: #{_lambda_.1} parent=1 // pred_check_branch
      %1739 = sbr.rel (0) target = $region101
    $region100: #{_lambda_.1} parent=1 // pred_region
      _
    $region101: #{_lambda_.1} parent=1 // pred_fallthru
      _
    // Predicated region
    $region102: #{_lambda_.1} parent=1 // pred_check
      _
    $region103: #{_lambda_.1} parent=1 // pred_check_branch
      %1741 = sbr.rel (0) target = $region105
    $region104: #{_lambda_.1} parent=1 // pred_region
      _
    $region105: #{_lambda_.1} parent=1 // pred_fallthru
      _
    %1742 = vsyncpa [#allocation3], 1
    %1743 = vsyncpa [#allocation5], 1
    %1744 = vsyncpa [#allocation8], 1
    %1745 = vsyncpa [#allocation11], 1

</llo_original>
